<compile_context>
chip_gen: v7x
topology: tpu7x:2x2x1
jax: 0.10.0
libtpu: 0.0.40
codegen_flags: <defaults>
</compile_context>

<pallas_src>
import functools

import jax
import jax.numpy as jnp
from jax.experimental import pallas as pl
from jax.experimental.pallas import tpu as pltpu


# ----------------------------------------------------------------------------
# Single fused kernel: one whole image per grid step.
# ----------------------------------------------------------------------------
def _block_kernel(x_ref, w_dw_ref, fc1_ref, fc2_ref, sc1_ref, sh1_ref,
                  w_pw_ref, sc2_ref, sh2_ref, o_ref, xp_ref,
                  *, stride, H, W, C, Ho, Wo):
    # x_ref   : (1, H, W, C)      input image (NHWC)
    # w_dw_ref: (3, 3, C)         depthwise 3x3 weights (f32)
    # fc1/fc2 : (C, C)            SE attention FCs (f32)
    # sc1/sh1 : (1, C)            BN1 folded scale/shift (f32)
    # w_pw_ref: (C, Cout)         pointwise 1x1 weights (bf16)
    # sc2/sh2 : (1, Cout)         BN2 folded scale/shift (f32)
    # o_ref   : (1, Ho*Wo, Cout)  output, spatial flattened (reshaped outside)
    # xp_ref  : (H+2, W+2, C) f32 VMEM scratch holding the zero-padded image

    # -- build the zero-padded image in VMEM (no HBM pad pass) ---------------
    xp_ref[...] = jnp.zeros_like(xp_ref)
    xp_ref[1:H + 1, 1:W + 1, :] = x_ref[0].astype(jnp.float32)
    xp = xp_ref[...]

    # -- depthwise 3x3 conv, f32 VPU math -------------------------------------
    acc = jnp.zeros((Ho, Wo, C), jnp.float32)
    for kh in range(3):
        for kw in range(3):
            sl = xp[kh:kh + (Ho - 1) * stride + 1:stride,
                    kw:kw + (Wo - 1) * stride + 1:stride, :]        # (Ho, Wo, C)
            acc = acc + sl * w_dw_ref[kh, kw, :].astype(jnp.float32)

    # -- SE attention: GAP -> FC -> ReLU -> FC -> sigmoid ---------------------
    m = (jnp.sum(acc, axis=(0, 1)) * (1.0 / (Ho * Wo))).reshape(1, C)
    h = jnp.maximum(
        jnp.dot(m, fc1_ref[...], preferred_element_type=jnp.float32), 0.0)
    a = jax.nn.sigmoid(
        jnp.dot(h, fc2_ref[...], preferred_element_type=jnp.float32))  # (1, C)

    # -- channel attention * BN1 (folded) + ReLU (f32 VPU) --------------------
    scale1 = (a * sc1_ref[...]).reshape(1, 1, C)
    shift1 = sh1_ref[...].reshape(1, 1, C)
    y = jnp.maximum(acc * scale1 + shift1, 0.0)

    # -- pointwise 1x1 conv as MXU matmul: bf16 operands, f32 accumulate ------
    y2d = y.reshape(Ho * Wo, C).astype(w_pw_ref.dtype)
    out = jnp.dot(y2d, w_pw_ref[...], preferred_element_type=jnp.float32)

    # -- BN2 (folded) + ReLU, store (layout already matches matmul result) ----
    out = jnp.maximum(out * sc2_ref[...] + sh2_ref[...], 0.0)
    o_ref[0] = out.astype(o_ref.dtype)


def block_forward(x_nhwc, params, stride=1):
    """Fused MobileNet Block forward. Input and output are NHWC."""
    N, H, W, C = x_nhwc.shape
    Ho = (H + 2 - 3) // stride + 1
    Wo = (W + 2 - 3) // stride + 1
    Cout = params["w_pw"].shape[1]

    sc1, sh1 = _fold_bn(params["bn1_gamma"], params["bn1_beta"],
                        params["bn1_mean"], params["bn1_var"])
    sc2, sh2 = _fold_bn(params["bn2_gamma"], params["bn2_beta"],
                        params["bn2_mean"], params["bn2_var"])
    # bf16 operands for the MXU matmul (accumulation stays f32 in-kernel).
    w_pw = params["w_pw"].astype(jnp.bfloat16)

    kern = functools.partial(_block_kernel, stride=stride,
                             H=H, W=W, C=C, Ho=Ho, Wo=Wo)

    out_flat = pl.pallas_call(
        kern,
        out_shape=jax.ShapeDtypeStruct((N, Ho * Wo, Cout), x_nhwc.dtype),
        grid=(N,),
        in_specs=[
            pl.BlockSpec((1, H, W, C), lambda n: (n, 0, 0, 0)),   # x
            pl.BlockSpec((3, 3, C), lambda n: (0, 0, 0)),         # w_dw
            pl.BlockSpec((C, C), lambda n: (0, 0)),               # fc1
            pl.BlockSpec((C, C), lambda n: (0, 0)),               # fc2
            pl.BlockSpec((1, C), lambda n: (0, 0)),               # bn1 scale
            pl.BlockSpec((1, C), lambda n: (0, 0)),               # bn1 shift
            pl.BlockSpec((C, Cout), lambda n: (0, 0)),            # w_pw (bf16)
            pl.BlockSpec((1, Cout), lambda n: (0, 0)),            # bn2 scale
            pl.BlockSpec((1, Cout), lambda n: (0, 0)),            # bn2 shift
        ],
        out_specs=pl.BlockSpec((1, Ho * Wo, Cout), lambda n: (n, 0, 0)),
        scratch_shapes=[pltpu.VMEM((H + 2, W + 2, C), jnp.float32)],
        compiler_params=pltpu.CompilerParams(
            dimension_semantics=("parallel",),
            vmem_limit_bytes=32 * 1024 * 1024,
        ),
    )(x_nhwc, params["w_dw"], params["fc1"], params["fc2"], sc1, sh1,
      w_pw, sc2, sh2)

    # Free reshape: row-major split of the flattened spatial axis.
    return out_flat.reshape(N, Ho, Wo, Cout)


# ----------------------------------------------------------------------------
# Parameters (deterministic, eval-mode BN) and helpers
# ----------------------------------------------------------------------------
def _fold_bn(gamma, beta, mean, var, eps=1e-5):
    scale = gamma / jnp.sqrt(var + eps)
    shift = beta - mean * scale
    return scale.reshape(1, -1), shift.reshape(1, -1)


def init_block_params(key, in_planes, out_planes):
    ks = jax.random.split(key, 8)
    p = {}
    # depthwise conv weight: PyTorch (in_planes, 1, 3, 3) -> ours (3, 3, C)
    p["w_dw"] = 0.1 * jax.random.normal(ks[0], (3, 3, in_planes), jnp.float32)
    # SE attention FCs (C x C each)
    p["fc1"] = 0.1 * jax.random.normal(ks[1], (in_planes, in_planes), jnp.float32)
    p["fc2"] = 0.1 * jax.random.normal(ks[2], (in_planes, in_planes), jnp.float32)
    # bn1 (eval mode)
    p["bn1_gamma"] = 1.0 + 0.1 * jax.random.normal(ks[3], (in_planes,), jnp.float32)
    p["bn1_beta"] = 0.1 * jax.random.normal(ks[4], (in_planes,), jnp.float32)
    p["bn1_mean"] = 0.05 * jax.random.normal(ks[5], (in_planes,), jnp.float32)
    p["bn1_var"] = jnp.ones((in_planes,), jnp.float32)
    # pointwise conv weight: PyTorch (out, in, 1, 1) -> ours (in, out)
    p["w_pw"] = 0.1 * jax.random.normal(ks[6], (in_planes, out_planes), jnp.float32)
    # bn2 (eval mode)
    p["bn2_gamma"] = jnp.ones((out_planes,), jnp.float32)
    p["bn2_beta"] = jnp.zeros((out_planes,), jnp.float32)
    p["bn2_mean"] = 0.05 * jax.random.normal(ks[7], (out_planes,), jnp.float32)
    p["bn2_var"] = jnp.ones((out_planes,), jnp.float32)
    return p


# ----------------------------------------------------------------------------
# Pure-JAX reference (same math, f32 matmuls) for correctness checking
# ----------------------------------------------------------------------------
def block_reference(x_nhwc, params, stride=1):
    N, H, W, C = x_nhwc.shape
    Ho = (H + 2 - 3) // stride + 1
    Wo = (W + 2 - 3) // stride + 1
    Cout = params["w_pw"].shape[1]
    xp = jnp.pad(x_nhwc.astype(jnp.float32), ((0, 0), (1, 1), (1, 1), (0, 0)))
    acc = jnp.zeros((N, Ho, Wo, C), jnp.float32)
    for kh in range(3):
        for kw in range(3):
            sl = xp[:, kh:kh + (Ho - 1) * stride + 1:stride,
                    kw:kw + (Wo - 1) * stride + 1:stride, :]
            acc = acc + sl * params["w_dw"][kh, kw, :]
    m = jnp.mean(acc, axis=(1, 2))                                  # (N, C)
    h = jnp.maximum(m @ params["fc1"], 0.0)
    a = jax.nn.sigmoid(h @ params["fc2"])                           # (N, C)
    sc1, sh1 = _fold_bn(params["bn1_gamma"], params["bn1_beta"],
                        params["bn1_mean"], params["bn1_var"])
    y = jnp.maximum(acc * a[:, None, None, :] * sc1.reshape(1, 1, 1, C)
                    + sh1.reshape(1, 1, 1, C), 0.0)
    sc2, sh2 = _fold_bn(params["bn2_gamma"], params["bn2_beta"],
                        params["bn2_mean"], params["bn2_var"])
    out = y.reshape(N * Ho * Wo, C) @ params["w_pw"]
    out = jnp.maximum(out * sc2 + sh2, 0.0)
    return out.reshape(N, Ho, Wo, Cout)


if __name__ == "__main__":
    key = jax.random.PRNGKey(0)
    k_x, k_p = jax.random.split(key)

    N, C_in, C_out, H, W = 2, 8, 16, 16, 16
    # NHWC end-to-end: no NCHW<->NHWC transpose passes in the hot path
    # (the PyTorch reference is NCHW; the layout change preserves the math).
    x = jax.random.normal(k_x, (N, H, W, C_in), jnp.float32)
    params = init_block_params(k_p, C_in, C_out)

    out = jax.block_until_ready(block_forward(x, params, stride=1))
    assert out.shape == (N, H, W, C_out), out.shape
    assert bool(jnp.all(jnp.isfinite(out)))

    # Numerical check vs. pure-JAX reference (loose tol: bf16 MXU operands).
    ref = block_reference(x, params, stride=1)
    max_err = float(jnp.max(jnp.abs(out - ref)))
    assert max_err < 1e-2, f"max abs err {max_err}"

    print("KERNEL_OK")
</pallas_src>

<mosaic_0001>
module attributes {stable_mosaic.version = 11 : i64} {
  func.func @_block_kernel(%arg0: i32, %arg1: memref<1x16x16x8xf32, #tpu.memory_space<vmem>>, %arg2: memref<3x3x8xf32, #tpu.memory_space<vmem>>, %arg3: memref<8x8xf32, #tpu.memory_space<vmem>>, %arg4: memref<8x8xf32, #tpu.memory_space<vmem>>, %arg5: memref<1x8xf32, #tpu.memory_space<vmem>>, %arg6: memref<1x8xf32, #tpu.memory_space<vmem>>, %arg7: memref<8x16xbf16, #tpu.memory_space<vmem>>, %arg8: memref<1x16xf32, #tpu.memory_space<vmem>>, %arg9: memref<1x16xf32, #tpu.memory_space<vmem>>, %arg10: memref<1x256x16xf32, #tpu.memory_space<vmem>>, %arg11: memref<18x18x8xf32, #tpu.memory_space<vmem>>) attributes {dimension_semantics = [#tpu.dimension_semantics<parallel>], iteration_bounds = array<i64: 2>, scalar_prefetch = 0 : i64, scratch_operands = 1 : i64, tpu.core_type = #tpu.core_type<tc>, window_params = [{transform_indices = @transform_0, window_bounds = array<i64: 1, 16, 16, 8>}, {pipeline_mode = #tpu.pipeline_mode<synchronous>, transform_indices = @transform_1, window_bounds = array<i64: 3, 3, 8>}, {pipeline_mode = #tpu.pipeline_mode<synchronous>, transform_indices = @transform_2, window_bounds = array<i64: 8, 8>}, {pipeline_mode = #tpu.pipeline_mode<synchronous>, transform_indices = @transform_3, window_bounds = array<i64: 8, 8>}, {pipeline_mode = #tpu.pipeline_mode<synchronous>, transform_indices = @transform_4, window_bounds = array<i64: 1, 8>}, {pipeline_mode = #tpu.pipeline_mode<synchronous>, transform_indices = @transform_5, window_bounds = array<i64: 1, 8>}, {pipeline_mode = #tpu.pipeline_mode<synchronous>, transform_indices = @transform_6, window_bounds = array<i64: 8, 16>}, {pipeline_mode = #tpu.pipeline_mode<synchronous>, transform_indices = @transform_7, window_bounds = array<i64: 1, 16>}, {pipeline_mode = #tpu.pipeline_mode<synchronous>, transform_indices = @transform_8, window_bounds = array<i64: 1, 16>}, {transform_indices = @transform_9, window_bounds = array<i64: 1, 256, 16>}]} {
    %cst = arith.constant 0.000000e+00 : f32
    %0 = vector.broadcast %cst : f32 to vector<18x18x8xf32>
    %c0 = arith.constant 0 : index
    %c0_0 = arith.constant 0 : index
    %c0_1 = arith.constant 0 : index
    %1 = vector.load %arg11[%c0, %c0_0, %c0_1] : memref<18x18x8xf32, #tpu.memory_space<vmem>>, vector<18x18x8xf32>
    tpu.vector_store %arg11[%c0, %c0_0, %c0_1], %0 {strides = array<i32>} : memref<18x18x8xf32, #tpu.memory_space<vmem>>, vector<18x18x8xf32>,
    %c0_2 = arith.constant 0 : index
    %c0_3 = arith.constant 0 : index
    %c0_4 = arith.constant 0 : index
    %c0_5 = arith.constant 0 : index
    %2 = vector.load %arg1[%c0_2, %c0_3, %c0_4, %c0_5] : memref<1x16x16x8xf32, #tpu.memory_space<vmem>>, vector<1x16x16x8xf32>
    %3 = vector.shape_cast %2 : vector<1x16x16x8xf32> to vector<16x16x8xf32>
    %c1 = arith.constant 1 : index
    %c1_6 = arith.constant 1 : index
    %c0_7 = arith.constant 0 : index
    %4 = vector.load %arg11[%c1, %c1_6, %c0_7] : memref<18x18x8xf32, #tpu.memory_space<vmem>>, vector<16x16x8xf32>
    tpu.vector_store %arg11[%c1, %c1_6, %c0_7], %3 {strides = array<i32>} : memref<18x18x8xf32, #tpu.memory_space<vmem>>, vector<16x16x8xf32>,
    %c0_8 = arith.constant 0 : index
    %c0_9 = arith.constant 0 : index
    %c0_10 = arith.constant 0 : index
    %5 = vector.load %arg11[%c0_8, %c0_9, %c0_10] : memref<18x18x8xf32, #tpu.memory_space<vmem>>, vector<18x18x8xf32>
    %cst_11 = arith.constant 0.000000e+00 : f32
    %6 = vector.broadcast %cst_11 : f32 to vector<16x16x8xf32>
    %7 = vector.extract_strided_slice %5 {offsets = [0, 0, 0], sizes = [16, 16, 8], strides = [1, 1, 1]} : vector<18x18x8xf32> to vector<16x16x8xf32>
    %c0_12 = arith.constant 0 : index
    %c0_13 = arith.constant 0 : index
    %c0_14 = arith.constant 0 : index
    %8 = vector.load %arg2[%c0_12, %c0_13, %c0_14] : memref<3x3x8xf32, #tpu.memory_space<vmem>>, vector<1x1x8xf32>
    %9 = vector.shape_cast %8 : vector<1x1x8xf32> to vector<8xf32>
    %10 = vector.shape_cast %9 : vector<8xf32> to vector<1x1x8xf32>
    %11 = vector.broadcast %10 : vector<1x1x8xf32> to vector<16x16x8xf32>
    %12 = arith.mulf %7, %11 : vector<16x16x8xf32>
    %13 = arith.addf %6, %12 : vector<16x16x8xf32>
    %14 = vector.extract_strided_slice %5 {offsets = [0, 1, 0], sizes = [16, 16, 8], strides = [1, 1, 1]} : vector<18x18x8xf32> to vector<16x16x8xf32>
    %c0_15 = arith.constant 0 : index
    %c1_16 = arith.constant 1 : index
    %c0_17 = arith.constant 0 : index
    %15 = vector.load %arg2[%c0_15, %c1_16, %c0_17] : memref<3x3x8xf32, #tpu.memory_space<vmem>>, vector<1x1x8xf32>
    %16 = vector.shape_cast %15 : vector<1x1x8xf32> to vector<8xf32>
    %17 = vector.shape_cast %16 : vector<8xf32> to vector<1x1x8xf32>
    %18 = vector.broadcast %17 : vector<1x1x8xf32> to vector<16x16x8xf32>
    %19 = arith.mulf %14, %18 : vector<16x16x8xf32>
    %20 = arith.addf %13, %19 : vector<16x16x8xf32>
    %21 = vector.extract_strided_slice %5 {offsets = [0, 2, 0], sizes = [16, 16, 8], strides = [1, 1, 1]} : vector<18x18x8xf32> to vector<16x16x8xf32>
    %c0_18 = arith.constant 0 : index
    %c2 = arith.constant 2 : index
    %c0_19 = arith.constant 0 : index
    %22 = vector.load %arg2[%c0_18, %c2, %c0_19] : memref<3x3x8xf32, #tpu.memory_space<vmem>>, vector<1x1x8xf32>
    %23 = vector.shape_cast %22 : vector<1x1x8xf32> to vector<8xf32>
    %24 = vector.shape_cast %23 : vector<8xf32> to vector<1x1x8xf32>
    %25 = vector.broadcast %24 : vector<1x1x8xf32> to vector<16x16x8xf32>
    %26 = arith.mulf %21, %25 : vector<16x16x8xf32>
    %27 = arith.addf %20, %26 : vector<16x16x8xf32>
    %28 = vector.extract_strided_slice %5 {offsets = [1, 0, 0], sizes = [16, 16, 8], strides = [1, 1, 1]} : vector<18x18x8xf32> to vector<16x16x8xf32>
    %c1_20 = arith.constant 1 : index
    %c0_21 = arith.constant 0 : index
    %c0_22 = arith.constant 0 : index
    %29 = vector.load %arg2[%c1_20, %c0_21, %c0_22] : memref<3x3x8xf32, #tpu.memory_space<vmem>>, vector<1x1x8xf32>
    %30 = vector.shape_cast %29 : vector<1x1x8xf32> to vector<8xf32>
    %31 = vector.shape_cast %30 : vector<8xf32> to vector<1x1x8xf32>
    %32 = vector.broadcast %31 : vector<1x1x8xf32> to vector<16x16x8xf32>
    %33 = arith.mulf %28, %32 : vector<16x16x8xf32>
    %34 = arith.addf %27, %33 : vector<16x16x8xf32>
    %35 = vector.extract_strided_slice %5 {offsets = [1, 1, 0], sizes = [16, 16, 8], strides = [1, 1, 1]} : vector<18x18x8xf32> to vector<16x16x8xf32>
    %c1_23 = arith.constant 1 : index
    %c1_24 = arith.constant 1 : index
    %c0_25 = arith.constant 0 : index
    %36 = vector.load %arg2[%c1_23, %c1_24, %c0_25] : memref<3x3x8xf32, #tpu.memory_space<vmem>>, vector<1x1x8xf32>
    %37 = vector.shape_cast %36 : vector<1x1x8xf32> to vector<8xf32>
    %38 = vector.shape_cast %37 : vector<8xf32> to vector<1x1x8xf32>
    %39 = vector.broadcast %38 : vector<1x1x8xf32> to vector<16x16x8xf32>
    %40 = arith.mulf %35, %39 : vector<16x16x8xf32>
    %41 = arith.addf %34, %40 : vector<16x16x8xf32>
    %42 = vector.extract_strided_slice %5 {offsets = [1, 2, 0], sizes = [16, 16, 8], strides = [1, 1, 1]} : vector<18x18x8xf32> to vector<16x16x8xf32>
    %c1_26 = arith.constant 1 : index
    %c2_27 = arith.constant 2 : index
    %c0_28 = arith.constant 0 : index
    %43 = vector.load %arg2[%c1_26, %c2_27, %c0_28] : memref<3x3x8xf32, #tpu.memory_space<vmem>>, vector<1x1x8xf32>
    %44 = vector.shape_cast %43 : vector<1x1x8xf32> to vector<8xf32>
    %45 = vector.shape_cast %44 : vector<8xf32> to vector<1x1x8xf32>
    %46 = vector.broadcast %45 : vector<1x1x8xf32> to vector<16x16x8xf32>
    %47 = arith.mulf %42, %46 : vector<16x16x8xf32>
    %48 = arith.addf %41, %47 : vector<16x16x8xf32>
    %49 = vector.extract_strided_slice %5 {offsets = [2, 0, 0], sizes = [16, 16, 8], strides = [1, 1, 1]} : vector<18x18x8xf32> to vector<16x16x8xf32>
    %c2_29 = arith.constant 2 : index
    %c0_30 = arith.constant 0 : index
    %c0_31 = arith.constant 0 : index
    %50 = vector.load %arg2[%c2_29, %c0_30, %c0_31] : memref<3x3x8xf32, #tpu.memory_space<vmem>>, vector<1x1x8xf32>
    %51 = vector.shape_cast %50 : vector<1x1x8xf32> to vector<8xf32>
    %52 = vector.shape_cast %51 : vector<8xf32> to vector<1x1x8xf32>
    %53 = vector.broadcast %52 : vector<1x1x8xf32> to vector<16x16x8xf32>
    %54 = arith.mulf %49, %53 : vector<16x16x8xf32>
    %55 = arith.addf %48, %54 : vector<16x16x8xf32>
    %56 = vector.extract_strided_slice %5 {offsets = [2, 1, 0], sizes = [16, 16, 8], strides = [1, 1, 1]} : vector<18x18x8xf32> to vector<16x16x8xf32>
    %c2_32 = arith.constant 2 : index
    %c1_33 = arith.constant 1 : index
    %c0_34 = arith.constant 0 : index
    %57 = vector.load %arg2[%c2_32, %c1_33, %c0_34] : memref<3x3x8xf32, #tpu.memory_space<vmem>>, vector<1x1x8xf32>
    %58 = vector.shape_cast %57 : vector<1x1x8xf32> to vector<8xf32>
    %59 = vector.shape_cast %58 : vector<8xf32> to vector<1x1x8xf32>
    %60 = vector.broadcast %59 : vector<1x1x8xf32> to vector<16x16x8xf32>
    %61 = arith.mulf %56, %60 : vector<16x16x8xf32>
    %62 = arith.addf %55, %61 : vector<16x16x8xf32>
    %63 = vector.extract_strided_slice %5 {offsets = [2, 2, 0], sizes = [16, 16, 8], strides = [1, 1, 1]} : vector<18x18x8xf32> to vector<16x16x8xf32>
    %c2_35 = arith.constant 2 : index
    %c2_36 = arith.constant 2 : index
    %c0_37 = arith.constant 0 : index
    %64 = vector.load %arg2[%c2_35, %c2_36, %c0_37] : memref<3x3x8xf32, #tpu.memory_space<vmem>>, vector<1x1x8xf32>
    %65 = vector.shape_cast %64 : vector<1x1x8xf32> to vector<8xf32>
    %66 = vector.shape_cast %65 : vector<8xf32> to vector<1x1x8xf32>
    %67 = vector.broadcast %66 : vector<1x1x8xf32> to vector<16x16x8xf32>
    %68 = arith.mulf %63, %67 : vector<16x16x8xf32>
    %69 = arith.addf %62, %68 : vector<16x16x8xf32>
    %cst_38 = arith.constant dense<0.000000e+00> : vector<8xf32>
    %70 = vector.multi_reduction <add>, %69, %cst_38 [0, 1] : vector<16x16x8xf32> to vector<8xf32>
    %cst_39 = arith.constant 3.906250e-03 : f32
    %71 = vector.broadcast %cst_39 : f32 to vector<8xf32>
    %72 = arith.mulf %70, %71 : vector<8xf32>
    %73 = vector.shape_cast %72 : vector<8xf32> to vector<1x8xf32>
    %c0_40 = arith.constant 0 : index
    %c0_41 = arith.constant 0 : index
    %74 = vector.load %arg3[%c0_40, %c0_41] : memref<8x8xf32, #tpu.memory_space<vmem>>, vector<8x8xf32>
    %cst_42 = arith.constant dense<0.000000e+00> : vector<1x8xf32>
    %75 = tpu.matmul %73, %74, %cst_42 {dimension_numbers = #tpu.dot_dimension_numbers<[1], [0], [0], [1], [0, 0, 1, 1], [], []>} : vector<1x8xf32>, vector<8x8xf32>, vector<1x8xf32> -> vector<1x8xf32>
    %cst_43 = arith.constant 0.000000e+00 : f32
    %76 = vector.broadcast %cst_43 : f32 to vector<1x8xf32>
    %77 = arith.maximumf %75, %76 : vector<1x8xf32>
    %c0_44 = arith.constant 0 : index
    %c0_45 = arith.constant 0 : index
    %78 = vector.load %arg4[%c0_44, %c0_45] : memref<8x8xf32, #tpu.memory_space<vmem>>, vector<8x8xf32>
    %cst_46 = arith.constant dense<0.000000e+00> : vector<1x8xf32>
    %79 = tpu.matmul %77, %78, %cst_46 {dimension_numbers = #tpu.dot_dimension_numbers<[1], [0], [0], [1], [0, 0, 1, 1], [], []>} : vector<1x8xf32>, vector<8x8xf32>, vector<1x8xf32> -> vector<1x8xf32>
    %80 = arith.negf %79 : vector<1x8xf32>
    %81 = math.exp %80 : vector<1x8xf32>
    %cst_47 = arith.constant 1.000000e+00 : f32
    %82 = vector.broadcast %cst_47 : f32 to vector<1x8xf32>
    %83 = arith.addf %82, %81 : vector<1x8xf32>
    %84 = arith.divf %82, %83 : vector<1x8xf32>
    %c0_48 = arith.constant 0 : index
    %c0_49 = arith.constant 0 : index
    %85 = vector.load %arg5[%c0_48, %c0_49] : memref<1x8xf32, #tpu.memory_space<vmem>>, vector<1x8xf32>
    %86 = arith.mulf %84, %85 : vector<1x8xf32>
    %87 = vector.shape_cast %86 : vector<1x8xf32> to vector<1x1x8xf32>
    %c0_50 = arith.constant 0 : index
    %c0_51 = arith.constant 0 : index
    %88 = vector.load %arg6[%c0_50, %c0_51] : memref<1x8xf32, #tpu.memory_space<vmem>>, vector<1x8xf32>
    %89 = vector.shape_cast %88 : vector<1x8xf32> to vector<1x1x8xf32>
    %90 = vector.broadcast %87 : vector<1x1x8xf32> to vector<16x16x8xf32>
    %91 = arith.mulf %69, %90 : vector<16x16x8xf32>
    %92 = vector.broadcast %89 : vector<1x1x8xf32> to vector<16x16x8xf32>
    %93 = arith.addf %91, %92 : vector<16x16x8xf32>
    %cst_52 = arith.constant 0.000000e+00 : f32
    %94 = vector.broadcast %cst_52 : f32 to vector<16x16x8xf32>
    %95 = arith.maximumf %93, %94 : vector<16x16x8xf32>
    %96 = vector.shape_cast %95 : vector<16x16x8xf32> to vector<256x8xf32>
    %97 = arith.truncf %96 : vector<256x8xf32> to vector<256x8xbf16>
    %c0_53 = arith.constant 0 : index
    %c0_54 = arith.constant 0 : index
    %98 = vector.load %arg7[%c0_53, %c0_54] : memref<8x16xbf16, #tpu.memory_space<vmem>>, vector<8x16xbf16>
    %cst_55 = arith.constant dense<0.000000e+00> : vector<256x16xf32>
    %99 = tpu.matmul %97, %98, %cst_55 {dimension_numbers = #tpu.dot_dimension_numbers<[1], [0], [0], [1], [0, 0, 1, 1], [], []>} : vector<256x8xbf16>, vector<8x16xbf16>, vector<256x16xf32> -> vector<256x16xf32>
    %c0_56 = arith.constant 0 : index
    %c0_57 = arith.constant 0 : index
    %100 = vector.load %arg8[%c0_56, %c0_57] : memref<1x16xf32, #tpu.memory_space<vmem>>, vector<1x16xf32>
    %101 = vector.broadcast %100 : vector<1x16xf32> to vector<256x16xf32>
    %102 = arith.mulf %99, %101 : vector<256x16xf32>
    %c0_58 = arith.constant 0 : index
    %c0_59 = arith.constant 0 : index
    %103 = vector.load %arg9[%c0_58, %c0_59] : memref<1x16xf32, #tpu.memory_space<vmem>>, vector<1x16xf32>
    %104 = vector.broadcast %103 : vector<1x16xf32> to vector<256x16xf32>
    %105 = arith.addf %102, %104 : vector<256x16xf32>
    %cst_60 = arith.constant 0.000000e+00 : f32
    %106 = vector.broadcast %cst_60 : f32 to vector<256x16xf32>
    %107 = arith.maximumf %105, %106 : vector<256x16xf32>
    %c0_61 = arith.constant 0 : index
    %c0_62 = arith.constant 0 : index
    %c0_63 = arith.constant 0 : index
    %108 = vector.load %arg10[%c0_61, %c0_62, %c0_63] : memref<1x256x16xf32, #tpu.memory_space<vmem>>, vector<1x256x16xf32>
    %109 = vector.shape_cast %108 : vector<1x256x16xf32> to vector<256x16xf32>
    %110 = vector.shape_cast %107 : vector<256x16xf32> to vector<1x256x16xf32>
    tpu.vector_store %arg10[%c0_61, %c0_62, %c0_63], %110 {strides = array<i32>} : memref<1x256x16xf32, #tpu.memory_space<vmem>>, vector<1x256x16xf32>,
    return
  }
  func.func @transform_0(%arg0: i32) -> (i32, i32, i32, i32) {
    %c0_i32 = arith.constant 0 : i32
    %c0_i32_0 = arith.constant 0 : i32
    %c0_i32_1 = arith.constant 0 : i32
    %c0_i32_2 = arith.constant 0 : i32
    return %arg0, %c0_i32, %c0_i32_0, %c0_i32_1 : i32, i32, i32, i32
  }
  func.func @transform_1(%arg0: i32) -> (i32, i32, i32) {
    %c0_i32 = arith.constant 0 : i32
    %c0_i32_0 = arith.constant 0 : i32
    %c0_i32_1 = arith.constant 0 : i32
    %c0_i32_2 = arith.constant 0 : i32
    return %c0_i32, %c0_i32_0, %c0_i32_1 : i32, i32, i32
  }
  func.func @transform_2(%arg0: i32) -> (i32, i32) {
    %c0_i32 = arith.constant 0 : i32
    %c0_i32_0 = arith.constant 0 : i32
    %c0_i32_1 = arith.constant 0 : i32
    return %c0_i32, %c0_i32_0 : i32, i32
  }
  func.func @transform_3(%arg0: i32) -> (i32, i32) {
    %c0_i32 = arith.constant 0 : i32
    %c0_i32_0 = arith.constant 0 : i32
    %c0_i32_1 = arith.constant 0 : i32
    return %c0_i32, %c0_i32_0 : i32, i32
  }
  func.func @transform_4(%arg0: i32) -> (i32, i32) {
    %c0_i32 = arith.constant 0 : i32
    %c0_i32_0 = arith.constant 0 : i32
    %c0_i32_1 = arith.constant 0 : i32
    return %c0_i32, %c0_i32_0 : i32, i32
  }
  func.func @transform_5(%arg0: i32) -> (i32, i32) {
    %c0_i32 = arith.constant 0 : i32
    %c0_i32_0 = arith.constant 0 : i32
    %c0_i32_1 = arith.constant 0 : i32
    return %c0_i32, %c0_i32_0 : i32, i32
  }
  func.func @transform_6(%arg0: i32) -> (i32, i32) {
    %c0_i32 = arith.constant 0 : i32
    %c0_i32_0 = arith.constant 0 : i32
    %c0_i32_1 = arith.constant 0 : i32
    return %c0_i32, %c0_i32_0 : i32, i32
  }
  func.func @transform_7(%arg0: i32) -> (i32, i32) {
    %c0_i32 = arith.constant 0 : i32
    %c0_i32_0 = arith.constant 0 : i32
    %c0_i32_1 = arith.constant 0 : i32
    return %c0_i32, %c0_i32_0 : i32, i32
  }
  func.func @transform_8(%arg0: i32) -> (i32, i32) {
    %c0_i32 = arith.constant 0 : i32
    %c0_i32_0 = arith.constant 0 : i32
    %c0_i32_1 = arith.constant 0 : i32
    return %c0_i32, %c0_i32_0 : i32, i32
  }
  func.func @transform_9(%arg0: i32) -> (i32, i32, i32) {
    %c0_i32 = arith.constant 0 : i32
    %c0_i32_0 = arith.constant 0 : i32
    %c0_i32_1 = arith.constant 0 : i32
    return %arg0, %c0_i32, %c0_i32_0 : i32, i32, i32
  }
}

</mosaic_0001>

<llo_original>
// kernel: tpu_custom_call.1
$region0: #{tpu_custom_call.1}
  #allocation0 [shape = 'u32[]', space=smem, size = 0x4, offset = 0x4, fixed_abs, tag = 'smem constant byte address 0x4 - core index']
  #allocation1 [shape = 'u32[144,128]{1,0:T(1,128)}', space=vmem, size = 0x12000, scoped, tag = 'internal scratch']
  #allocation2 [shape = 'f32[18,18,8]{2,1,0:T(8,128)}', space=vmem, size = 0x36000, scoped, tag = 'scratch operand']
  %s0 = inlined_call_operand.vmem [shape: f32[2,16,16,8], index: 0, kind: input, shape index: {}]
  %s1 = inlined_call_operand.vmem [shape: f32[3,3,8], index: 1, kind: input, shape index: {}]
  %s2 = inlined_call_operand.vmem [shape: f32[8,8], index: 2, kind: input, shape index: {}]
  %s3 = inlined_call_operand.vmem [shape: f32[8,8], index: 3, kind: input, shape index: {}]
  %s4 = inlined_call_operand.vmem [shape: f32[1,8], index: 4, kind: input, shape index: {}]
  %s5 = inlined_call_operand.vmem [shape: f32[1,8], index: 5, kind: input, shape index: {}]
  %s6 = inlined_call_operand.vmem [shape: bf16[8,16], index: 6, kind: input, shape index: {}]
  %s7 = inlined_call_operand.vmem [shape: f32[1,16], index: 7, kind: input, shape index: {}]
  %s8 = inlined_call_operand.vmem [shape: f32[1,16], index: 8, kind: input, shape index: {}]
  %s9 = inlined_call_operand.vmem [shape: f32[2,256,16], index: 9, kind: output, shape index: {}]
  %s10 = sld [smem:[#allocation0]]
  $region69: #{tpu_custom_call.1} parent=0
    _
  %s12 = ssub.s32 1, %s10
  %s13 = scalar_select 0, %s12, %s10
  loop: start=0, step=1, limit=4
  $region2: #{tpu_custom_call.1} parent=0 // loop_pre_header
    _
  $region3: #{tpu_custom_call.1} parent=0 // loop_header
    %s15 = sphi 0, %s19
    %p16 = scmp.ge.s32.totalorder %s15, 4
    %s25 = sphi 0, %s27
    %s28 = sphi 0, %s25
    %s29 = sphi 0, %s28
    %s45 = sphi 0, %s29
    %s49 = sphi 0, %s49
    %s51 = sphi 0, %s49
    %s52 = sphi 0, %s51
    %s66 = sphi 0, %s52
    %s70 = sphi 0, %s70
    %s72 = sphi 0, %s70
    %s73 = sphi 0, %s72
    %s87 = sphi 0, %s73
    %s91 = sphi 0, %s91
    %s93 = sphi 0, %s91
    %s94 = sphi 0, %s93
    %s108 = sphi 0, %s94
    %s112 = sphi 0, %s112
    %s114 = sphi 0, %s112
    %s115 = sphi 0, %s114
    %s129 = sphi 0, %s115
    %s133 = sphi 0, %s133
    %s135 = sphi 0, %s133
    %s136 = sphi 0, %s135
    %s150 = sphi 0, %s136
    %s154 = sphi 0, %s154
    %s156 = sphi 0, %s154
    %s157 = sphi 0, %s156
    %s171 = sphi 0, %s157
    %s175 = sphi 0, %s175
    %s177 = sphi 0, %s175
    %s178 = sphi 0, %s177
    %s192 = sphi 0, %s178
    %s196 = sphi 0, %s196
    %s198 = sphi 0, %s196
    %s199 = sphi 0, %s198
    %s213 = sphi 0, %s199
    %s219 = sphi 0, %s221
    %s222 = sphi 0, %s219
    %s223 = sphi 0, %s222
    %s239 = sphi 0, %s223
  $region4: #{tpu_custom_call.1} parent=0 // loop_header_branch
    %18 = sbr.rel (%p16) target = $region8
  $region5: #{tpu_custom_call.1} parent=0 // loop_body
    %s20 = ssub.s32 %s15, 1
    %s21 = ssub.s32 %s15, 2
    %s22 = sadd.s32 %s15, 1
    %s23 = ssub.s32 %s15, %s22
    %p24 = scmp.eq.s32.totalorder %s23, 0
    %s26 = sadd.s32 %s25, 1
    %s27 = scalar_select %p24, %s25, %s26
    %p30 = pneg %p24
    %p31 = scmp.eq.s32.totalorder %s15, 1
    %p32 = por %p30, %p31
    %p33 = scmp.ne.s32.totalorder %s25, %s28
    %p34 = scmp.eq.s32.totalorder %s15, 0
    %p35 = por %p33, %p34
    %p36 = scmp.ne.s32.totalorder %s25, %s28
    %p37 = scmp.eq.s32.totalorder %s20, 1
    %p38 = por %p36, %p37
    %p39 = scmp.ne.s32.totalorder %s28, %s29
    %p40 = scmp.eq.s32.totalorder %s20, 0
    %p41 = por %p39, %p40
    %p42 = scmp.ne.s32.totalorder %s28, %s29
    %p43 = scmp.eq.s32.totalorder %s21, 1
    %p44 = por %p42, %p43
    %p46 = scmp.ne.s32.totalorder %s29, %s45
    %p47 = scmp.eq.s32.totalorder %s21, 0
    %p48 = por %p46, %p47
    %s50 = sadd.s32 %s49, 1
    %p53 = scmp.eq.s32.totalorder %s15, 1
    %p54 = scmp.ne.s32.totalorder %s49, %s51
    %p55 = scmp.eq.s32.totalorder %s15, 0
    %p56 = por %p54, %p55
    %p57 = scmp.ne.s32.totalorder %s49, %s51
    %p58 = scmp.eq.s32.totalorder %s20, 1
    %p59 = por %p57, %p58
    %p60 = scmp.ne.s32.totalorder %s51, %s52
    %p61 = scmp.eq.s32.totalorder %s20, 0
    %p62 = por %p60, %p61
    %p63 = scmp.ne.s32.totalorder %s51, %s52
    %p64 = scmp.eq.s32.totalorder %s21, 1
    %p65 = por %p63, %p64
    %p67 = scmp.ne.s32.totalorder %s52, %s66
    %p68 = scmp.eq.s32.totalorder %s21, 0
    %p69 = por %p67, %p68
    %s71 = sadd.s32 %s70, 1
    %p74 = scmp.eq.s32.totalorder %s15, 1
    %p75 = scmp.ne.s32.totalorder %s70, %s72
    %p76 = scmp.eq.s32.totalorder %s15, 0
    %p77 = por %p75, %p76
    %p78 = scmp.ne.s32.totalorder %s70, %s72
    %p79 = scmp.eq.s32.totalorder %s20, 1
    %p80 = por %p78, %p79
    %p81 = scmp.ne.s32.totalorder %s72, %s73
    %p82 = scmp.eq.s32.totalorder %s20, 0
    %p83 = por %p81, %p82
    %p84 = scmp.ne.s32.totalorder %s72, %s73
    %p85 = scmp.eq.s32.totalorder %s21, 1
    %p86 = por %p84, %p85
    %p88 = scmp.ne.s32.totalorder %s73, %s87
    %p89 = scmp.eq.s32.totalorder %s21, 0
    %p90 = por %p88, %p89
    %s92 = sadd.s32 %s91, 1
    %p95 = scmp.eq.s32.totalorder %s15, 1
    %p96 = scmp.ne.s32.totalorder %s91, %s93
    %p97 = scmp.eq.s32.totalorder %s15, 0
    %p98 = por %p96, %p97
    %p99 = scmp.ne.s32.totalorder %s91, %s93
    %p100 = scmp.eq.s32.totalorder %s20, 1
    %p101 = por %p99, %p100
    %p102 = scmp.ne.s32.totalorder %s93, %s94
    %p103 = scmp.eq.s32.totalorder %s20, 0
    %p104 = por %p102, %p103
    %p105 = scmp.ne.s32.totalorder %s93, %s94
    %p106 = scmp.eq.s32.totalorder %s21, 1
    %p107 = por %p105, %p106
    %p109 = scmp.ne.s32.totalorder %s94, %s108
    %p110 = scmp.eq.s32.totalorder %s21, 0
    %p111 = por %p109, %p110
    %s113 = sadd.s32 %s112, 1
    %p116 = scmp.eq.s32.totalorder %s15, 1
    %p117 = scmp.ne.s32.totalorder %s112, %s114
    %p118 = scmp.eq.s32.totalorder %s15, 0
    %p119 = por %p117, %p118
    %p120 = scmp.ne.s32.totalorder %s112, %s114
    %p121 = scmp.eq.s32.totalorder %s20, 1
    %p122 = por %p120, %p121
    %p123 = scmp.ne.s32.totalorder %s114, %s115
    %p124 = scmp.eq.s32.totalorder %s20, 0
    %p125 = por %p123, %p124
    %p126 = scmp.ne.s32.totalorder %s114, %s115
    %p127 = scmp.eq.s32.totalorder %s21, 1
    %p128 = por %p126, %p127
    %p130 = scmp.ne.s32.totalorder %s115, %s129
    %p131 = scmp.eq.s32.totalorder %s21, 0
    %p132 = por %p130, %p131
    %s134 = sadd.s32 %s133, 1
    %p137 = scmp.eq.s32.totalorder %s15, 1
    %p138 = scmp.ne.s32.totalorder %s133, %s135
    %p139 = scmp.eq.s32.totalorder %s15, 0
    %p140 = por %p138, %p139
    %p141 = scmp.ne.s32.totalorder %s133, %s135
    %p142 = scmp.eq.s32.totalorder %s20, 1
    %p143 = por %p141, %p142
    %p144 = scmp.ne.s32.totalorder %s135, %s136
    %p145 = scmp.eq.s32.totalorder %s20, 0
    %p146 = por %p144, %p145
    %p147 = scmp.ne.s32.totalorder %s135, %s136
    %p148 = scmp.eq.s32.totalorder %s21, 1
    %p149 = por %p147, %p148
    %p151 = scmp.ne.s32.totalorder %s136, %s150
    %p152 = scmp.eq.s32.totalorder %s21, 0
    %p153 = por %p151, %p152
    %s155 = sadd.s32 %s154, 1
    %p158 = scmp.eq.s32.totalorder %s15, 1
    %p159 = scmp.ne.s32.totalorder %s154, %s156
    %p160 = scmp.eq.s32.totalorder %s15, 0
    %p161 = por %p159, %p160
    %p162 = scmp.ne.s32.totalorder %s154, %s156
    %p163 = scmp.eq.s32.totalorder %s20, 1
    %p164 = por %p162, %p163
    %p165 = scmp.ne.s32.totalorder %s156, %s157
    %p166 = scmp.eq.s32.totalorder %s20, 0
    %p167 = por %p165, %p166
    %p168 = scmp.ne.s32.totalorder %s156, %s157
    %p169 = scmp.eq.s32.totalorder %s21, 1
    %p170 = por %p168, %p169
    %p172 = scmp.ne.s32.totalorder %s157, %s171
    %p173 = scmp.eq.s32.totalorder %s21, 0
    %p174 = por %p172, %p173
    %s176 = sadd.s32 %s175, 1
    %p179 = scmp.eq.s32.totalorder %s15, 1
    %p180 = scmp.ne.s32.totalorder %s175, %s177
    %p181 = scmp.eq.s32.totalorder %s15, 0
    %p182 = por %p180, %p181
    %p183 = scmp.ne.s32.totalorder %s175, %s177
    %p184 = scmp.eq.s32.totalorder %s20, 1
    %p185 = por %p183, %p184
    %p186 = scmp.ne.s32.totalorder %s177, %s178
    %p187 = scmp.eq.s32.totalorder %s20, 0
    %p188 = por %p186, %p187
    %p189 = scmp.ne.s32.totalorder %s177, %s178
    %p190 = scmp.eq.s32.totalorder %s21, 1
    %p191 = por %p189, %p190
    %p193 = scmp.ne.s32.totalorder %s178, %s192
    %p194 = scmp.eq.s32.totalorder %s21, 0
    %p195 = por %p193, %p194
    %s197 = sadd.s32 %s196, 1
    %p200 = scmp.eq.s32.totalorder %s15, 1
    %p201 = scmp.ne.s32.totalorder %s196, %s198
    %p202 = scmp.eq.s32.totalorder %s15, 0
    %p203 = por %p201, %p202
    %p204 = scmp.ne.s32.totalorder %s196, %s198
    %p205 = scmp.eq.s32.totalorder %s20, 1
    %p206 = por %p204, %p205
    %p207 = scmp.ne.s32.totalorder %s198, %s199
    %p208 = scmp.eq.s32.totalorder %s20, 0
    %p209 = por %p207, %p208
    %p210 = scmp.ne.s32.totalorder %s198, %s199
    %p211 = scmp.eq.s32.totalorder %s21, 1
    %p212 = por %p210, %p211
    %p214 = scmp.ne.s32.totalorder %s199, %s213
    %p215 = scmp.eq.s32.totalorder %s21, 0
    %p216 = por %p214, %p215
    %s217 = ssub.s32 %s15, %s22
    %p218 = scmp.eq.s32.totalorder %s217, 0
    %s220 = sadd.s32 %s219, 1
    %s221 = scalar_select %p218, %s219, %s220
    %p224 = pneg %p218
    %p225 = scmp.eq.s32.totalorder %s15, 1
    %p226 = por %p224, %p225
    %p227 = scmp.ne.s32.totalorder %s219, %s222
    %p228 = scmp.eq.s32.totalorder %s15, 0
    %p229 = por %p227, %p228
    %p230 = scmp.ne.s32.totalorder %s219, %s222
    %p231 = scmp.eq.s32.totalorder %s20, 1
    %p232 = por %p230, %p231
    %p233 = scmp.ne.s32.totalorder %s222, %s223
    %p234 = scmp.eq.s32.totalorder %s20, 0
    %p235 = por %p233, %p234
    %p236 = scmp.ne.s32.totalorder %s222, %s223
    %p237 = scmp.eq.s32.totalorder %s21, 1
    %p238 = por %p236, %p237
    %p240 = scmp.ne.s32.totalorder %s223, %s239
    %p241 = scmp.eq.s32.totalorder %s21, 0
    %p242 = por %p240, %p241
    %p243 = scmp.le.s32.totalorder 1, %s15
    %p244 = scmp.lt.s32.totalorder %s15, 3
    %p245 = pnand %p243, %p244
    %p246 = pneg %p245
    // Predicated region
    $region9: #{tpu_custom_call.1} parent=5 // pred_check
      _
    $region10: #{tpu_custom_call.1} parent=5 // pred_check_branch
      %248 = sbr.rel (%p245) target = $region12
    $region11: #{tpu_custom_call.1} parent=5 // pred_region
      %s249 = ssub.s32 %s15, 1
      // Predicated region
      $region13: #{tpu_custom_call.1} parent=11 // pred_check
        %p250 = pneg %p62
      $region14: #{tpu_custom_call.1} parent=11 // pred_check_branch
        %252 = sbr.rel (%p250) target = $region16
      $region15: #{tpu_custom_call.1} parent=11 // pred_region
        _
      $region16: #{tpu_custom_call.1} parent=11 // pred_fallthru
        _
      // Predicated region
      $region17: #{tpu_custom_call.1} parent=11 // pred_check
        %p253 = pneg %p83
      $region18: #{tpu_custom_call.1} parent=11 // pred_check_branch
        %255 = sbr.rel (%p253) target = $region20
      $region19: #{tpu_custom_call.1} parent=11 // pred_region
        _
      $region20: #{tpu_custom_call.1} parent=11 // pred_fallthru
        _
      // Predicated region
      $region21: #{tpu_custom_call.1} parent=11 // pred_check
        %p256 = pneg %p104
      $region22: #{tpu_custom_call.1} parent=11 // pred_check_branch
        %258 = sbr.rel (%p256) target = $region24
      $region23: #{tpu_custom_call.1} parent=11 // pred_region
        _
      $region24: #{tpu_custom_call.1} parent=11 // pred_fallthru
        _
      // Predicated region
      $region25: #{tpu_custom_call.1} parent=11 // pred_check
        %p259 = pneg %p125
      $region26: #{tpu_custom_call.1} parent=11 // pred_check_branch
        %261 = sbr.rel (%p259) target = $region28
      $region27: #{tpu_custom_call.1} parent=11 // pred_region
        _
      $region28: #{tpu_custom_call.1} parent=11 // pred_fallthru
        _
      // Predicated region
      $region29: #{tpu_custom_call.1} parent=11 // pred_check
        %p262 = pneg %p146
      $region30: #{tpu_custom_call.1} parent=11 // pred_check_branch
        %264 = sbr.rel (%p262) target = $region32
      $region31: #{tpu_custom_call.1} parent=11 // pred_region
        _
      $region32: #{tpu_custom_call.1} parent=11 // pred_fallthru
        _
      // Predicated region
      $region33: #{tpu_custom_call.1} parent=11 // pred_check
        %p265 = pneg %p167
      $region34: #{tpu_custom_call.1} parent=11 // pred_check_branch
        %267 = sbr.rel (%p265) target = $region36
      $region35: #{tpu_custom_call.1} parent=11 // pred_region
        _
      $region36: #{tpu_custom_call.1} parent=11 // pred_fallthru
        _
      // Predicated region
      $region37: #{tpu_custom_call.1} parent=11 // pred_check
        %p268 = pneg %p188
      $region38: #{tpu_custom_call.1} parent=11 // pred_check_branch
        %270 = sbr.rel (%p268) target = $region40
      $region39: #{tpu_custom_call.1} parent=11 // pred_region
        _
      $region40: #{tpu_custom_call.1} parent=11 // pred_fallthru
        _
      // Predicated region
      $region41: #{tpu_custom_call.1} parent=11 // pred_check
        %p271 = pneg %p209
      $region42: #{tpu_custom_call.1} parent=11 // pred_check_branch
        %273 = sbr.rel (%p271) target = $region44
      $region43: #{tpu_custom_call.1} parent=11 // pred_region
        _
      $region44: #{tpu_custom_call.1} parent=11 // pred_fallthru
        _
    $region12: #{tpu_custom_call.1} parent=5 // pred_fallthru
      _
    %p274 = scmp.lt.s32.totalorder %s15, 2
    // Predicated region
    $region45: #{tpu_custom_call.1} parent=5 // pred_check
      %p275 = pneg %p274
    $region46: #{tpu_custom_call.1} parent=5 // pred_check_branch
      %277 = sbr.rel (%p275) target = $region48
    $region47: #{tpu_custom_call.1} parent=5 // pred_region
      // Predicated region
      $region49: #{tpu_custom_call.1} parent=47 // pred_check
        %p278 = pneg %p35
      $region50: #{tpu_custom_call.1} parent=47 // pred_check_branch
        %280 = sbr.rel (%p278) target = $region52
      $region51: #{tpu_custom_call.1} parent=47 // pred_region
        %p281 = scmp.lt.s32.totalorder %s15, 1
        %s282 = scalar_select %p281, %s15, 1
        %s283 = smul.addr %s282, 32
        %s284 = smul.addr %s283, 8
        %s285 = scalar_lea.vmem %s0, %s284
      $region52: #{tpu_custom_call.1} parent=47 // pred_fallthru
        _
    $region48: #{tpu_custom_call.1} parent=5 // pred_fallthru
      _
    %p286 = scmp.le.s32.totalorder 1, %s15
    %p287 = scmp.lt.s32.totalorder %s15, 3
    %p288 = pnand %p286, %p287
    %p289 = pneg %p288
    // Predicated region
    $region53: #{tpu_custom_call.1} parent=5 // pred_check
      _
    $region54: #{tpu_custom_call.1} parent=5 // pred_check_branch
      %291 = sbr.rel (%p288) target = $region56
    $region55: #{tpu_custom_call.1} parent=5 // pred_region
      %s292 = ssub.s32 %s15, 1
      %p293 = scmp.lt.s32.totalorder %s20, 1
      %s294 = scalar_select %p293, %s20, 1
      %s295 = smul.addr %s294, 32
      %s296 = smul.addr %s295, 8
      %s297 = scalar_lea.vmem %s0, %s296
      %p298 = pneg %p41
      %p299 = pneg %p38
      %p300 = pneg %p62
      %p301 = pneg %p59
      %p302 = pneg %p83
      %p303 = pneg %p80
      %p304 = pneg %p104
      %p305 = pneg %p101
      %p306 = pneg %p125
      %p307 = pneg %p122
      %p308 = pneg %p146
      %p309 = pneg %p143
      %p310 = pneg %p167
      %p311 = pneg %p164
      %p312 = pneg %p188
      %p313 = pneg %p185
      %p314 = pneg %p209
      %p315 = pneg %p206
      %p316 = pneg %p235
      %p317 = pneg %p232
      %p318 = scmp.lt.s32.totalorder %s20, 1
      %s319 = scalar_select %p318, %s20, 1
      %s320 = smul.addr %s319, 32
      %s321 = smul.addr %s320, 8
      %s322 = scalar_lea.vmem %s9, %s321
      %p323 = scmp.lt.s32.totalorder %s20, 1
      %s324 = scalar_select %p323, %s20, 1
      %s325 = smul.addr %s324, 32
      %s326 = smul.addr %s325, 8
      %s327 = scalar_lea.vmem %s0, %s326
      %p328 = scmp.lt.s32.totalorder %s20, 1
      %s329 = scalar_select %p328, %s20, 1
      %s330 = smul.addr %s329, 32
      %s331 = smul.addr %s330, 8
      %s332 = scalar_lea.vmem %s9, %s331
      %vm334 = vcmask 64512
      %335 = vst.msk [vmem:[#allocation2] sm:$0xff] %vm334, 0.0
      %336 = vst.msk [vmem:[#allocation2 + $0x8] sm:$0xff] %vm334, 0.0
      %vm337 = vcmask 58368
      %338 = vst.msk [vmem:[#allocation2 + $0x10] sm:$0x3] %vm337, 0.0
      %339 = vst.msk [vmem:[#allocation2 + $0x18] sm:$0xff] %vm334, 0.0
      %340 = vst.msk [vmem:[#allocation2 + $0x20] sm:$0xff] %vm334, 0.0
      %341 = vst.msk [vmem:[#allocation2 + $0x28] sm:$0x3] %vm337, 0.0
      %342 = vst.msk [vmem:[#allocation2 + $0x30] sm:$0xff] %vm334, 0.0
      %343 = vst.msk [vmem:[#allocation2 + $0x38] sm:$0xff] %vm334, 0.0
      %344 = vst.msk [vmem:[#allocation2 + $0x40] sm:$0x3] %vm337, 0.0
      %345 = vst.msk [vmem:[#allocation2 + $0x48] sm:$0xff] %vm334, 0.0
      %346 = vst.msk [vmem:[#allocation2 + $0x50] sm:$0xff] %vm334, 0.0
      %347 = vst.msk [vmem:[#allocation2 + $0x58] sm:$0x3] %vm337, 0.0
      %348 = vst.msk [vmem:[#allocation2 + $0x60] sm:$0xff] %vm334, 0.0
      %349 = vst.msk [vmem:[#allocation2 + $0x68] sm:$0xff] %vm334, 0.0
      %350 = vst.msk [vmem:[#allocation2 + $0x70] sm:$0x3] %vm337, 0.0
      %351 = vst.msk [vmem:[#allocation2 + $0x78] sm:$0xff] %vm334, 0.0
      %352 = vst.msk [vmem:[#allocation2 + $0x80] sm:$0xff] %vm334, 0.0
      %353 = vst.msk [vmem:[#allocation2 + $0x88] sm:$0x3] %vm337, 0.0
      %354 = vst.msk [vmem:[#allocation2 + $0x90] sm:$0xff] %vm334, 0.0
      %355 = vst.msk [vmem:[#allocation2 + $0x98] sm:$0xff] %vm334, 0.0
      %356 = vst.msk [vmem:[#allocation2 + $0xa0] sm:$0x3] %vm337, 0.0
      %357 = vst.msk [vmem:[#allocation2 + $0xa8] sm:$0xff] %vm334, 0.0
      %358 = vst.msk [vmem:[#allocation2 + $0xb0] sm:$0xff] %vm334, 0.0
      %359 = vst.msk [vmem:[#allocation2 + $0xb8] sm:$0x3] %vm337, 0.0
      %360 = vst.msk [vmem:[#allocation2 + $0xc0] sm:$0xff] %vm334, 0.0
      %361 = vst.msk [vmem:[#allocation2 + $0xc8] sm:$0xff] %vm334, 0.0
      %362 = vst.msk [vmem:[#allocation2 + $0xd0] sm:$0x3] %vm337, 0.0
      %363 = vst.msk [vmem:[#allocation2 + $0xd8] sm:$0xff] %vm334, 0.0
      %364 = vst.msk [vmem:[#allocation2 + $0xe0] sm:$0xff] %vm334, 0.0
      %365 = vst.msk [vmem:[#allocation2 + $0xe8] sm:$0x3] %vm337, 0.0
      %366 = vst.msk [vmem:[#allocation2 + $0xf0] sm:$0xff] %vm334, 0.0
      %367 = vst.msk [vmem:[#allocation2 + $0xf8] sm:$0xff] %vm334, 0.0
      %368 = vst.msk [vmem:[#allocation2 + $0x100] sm:$0x3] %vm337, 0.0
      %369 = vst.msk [vmem:[#allocation2 + $0x108] sm:$0xff] %vm334, 0.0
      %370 = vst.msk [vmem:[#allocation2 + $0x110] sm:$0xff] %vm334, 0.0
      %371 = vst.msk [vmem:[#allocation2 + $0x118] sm:$0x3] %vm337, 0.0
      %372 = vst.msk [vmem:[#allocation2 + $0x120] sm:$0xff] %vm334, 0.0
      %373 = vst.msk [vmem:[#allocation2 + $0x128] sm:$0xff] %vm334, 0.0
      %374 = vst.msk [vmem:[#allocation2 + $0x130] sm:$0x3] %vm337, 0.0
      %375 = vst.msk [vmem:[#allocation2 + $0x138] sm:$0xff] %vm334, 0.0
      %376 = vst.msk [vmem:[#allocation2 + $0x140] sm:$0xff] %vm334, 0.0
      %377 = vst.msk [vmem:[#allocation2 + $0x148] sm:$0x3] %vm337, 0.0
      %378 = vst.msk [vmem:[#allocation2 + $0x150] sm:$0xff] %vm334, 0.0
      %379 = vst.msk [vmem:[#allocation2 + $0x158] sm:$0xff] %vm334, 0.0
      %380 = vst.msk [vmem:[#allocation2 + $0x160] sm:$0x3] %vm337, 0.0
      %381 = vst.msk [vmem:[#allocation2 + $0x168] sm:$0xff] %vm334, 0.0
      %382 = vst.msk [vmem:[#allocation2 + $0x170] sm:$0xff] %vm334, 0.0
      %383 = vst.msk [vmem:[#allocation2 + $0x178] sm:$0x3] %vm337, 0.0
      %384 = vst.msk [vmem:[#allocation2 + $0x180] sm:$0xff] %vm334, 0.0
      %385 = vst.msk [vmem:[#allocation2 + $0x188] sm:$0xff] %vm334, 0.0
      %386 = vst.msk [vmem:[#allocation2 + $0x190] sm:$0x3] %vm337, 0.0
      %387 = vst.msk [vmem:[#allocation2 + $0x198] sm:$0xff] %vm334, 0.0
      %388 = vst.msk [vmem:[#allocation2 + $0x1a0] sm:$0xff] %vm334, 0.0
      %389 = vst.msk [vmem:[#allocation2 + $0x1a8] sm:$0x3] %vm337, 0.0
      %v390 = vld [vmem:[%s327] sm:$0xff]
      %v391 = vld [vmem:[%s327 + $0x8] sm:$0xff]
      %v392 = vld [vmem:[%s327 + $0x10] sm:$0xff]
      %v393 = vld [vmem:[%s327 + $0x18] sm:$0xff]
      %v394 = vld [vmem:[%s327 + $0x20] sm:$0xff]
      %v395 = vld [vmem:[%s327 + $0x28] sm:$0xff]
      %v396 = vld [vmem:[%s327 + $0x30] sm:$0xff]
      %v397 = vld [vmem:[%s327 + $0x38] sm:$0xff]
      %v398 = vld [vmem:[%s327 + $0x40] sm:$0xff]
      %v399 = vld [vmem:[%s327 + $0x48] sm:$0xff]
      %v400 = vld [vmem:[%s327 + $0x50] sm:$0xff]
      %v401 = vld [vmem:[%s327 + $0x58] sm:$0xff]
      %v402 = vld [vmem:[%s327 + $0x60] sm:$0xff]
      %v403 = vld [vmem:[%s327 + $0x68] sm:$0xff]
      %v404 = vld [vmem:[%s327 + $0x70] sm:$0xff]
      %v405 = vld [vmem:[%s327 + $0x78] sm:$0xff]
      %v406 = vld [vmem:[%s327 + $0x80] sm:$0xff]
      %v407 = vld [vmem:[%s327 + $0x88] sm:$0xff]
      %v408 = vld [vmem:[%s327 + $0x90] sm:$0xff]
      %v409 = vld [vmem:[%s327 + $0x98] sm:$0xff]
      %v410 = vld [vmem:[%s327 + $0xa0] sm:$0xff]
      %v411 = vld [vmem:[%s327 + $0xa8] sm:$0xff]
      %v412 = vld [vmem:[%s327 + $0xb0] sm:$0xff]
      %v413 = vld [vmem:[%s327 + $0xb8] sm:$0xff]
      %v414 = vld [vmem:[%s327 + $0xc0] sm:$0xff]
      %v415 = vld [vmem:[%s327 + $0xc8] sm:$0xff]
      %v416 = vld [vmem:[%s327 + $0xd0] sm:$0xff]
      %v417 = vld [vmem:[%s327 + $0xd8] sm:$0xff]
      %v418 = vld [vmem:[%s327 + $0xe0] sm:$0xff]
      %v419 = vld [vmem:[%s327 + $0xe8] sm:$0xff]
      %v420 = vld [vmem:[%s327 + $0xf0] sm:$0xff]
      %v421 = vld [vmem:[%s327 + $0xf8] sm:$0xff]
      %s422 = scalar_lea.vmem [#allocation2], 24
      %423 = vst.msk [vmem:[%s422 + $0x1] sm:$0xff] %vm334, %v390
      %424 = vst.msk [vmem:[%s422 + $0x9] sm:$0xff] %vm334, %v391
      %425 = vst.msk [vmem:[%s422 + $0x19] sm:$0xff] %vm334, %v392
      %426 = vst.msk [vmem:[%s422 + $0x21] sm:$0xff] %vm334, %v393
      %427 = vst.msk [vmem:[%s422 + $0x31] sm:$0xff] %vm334, %v394
      %428 = vst.msk [vmem:[%s422 + $0x39] sm:$0xff] %vm334, %v395
      %429 = vst.msk [vmem:[%s422 + $0x49] sm:$0xff] %vm334, %v396
      %430 = vst.msk [vmem:[%s422 + $0x51] sm:$0xff] %vm334, %v397
      %431 = vst.msk [vmem:[%s422 + $0x61] sm:$0xff] %vm334, %v398
      %432 = vst.msk [vmem:[%s422 + $0x69] sm:$0xff] %vm334, %v399
      %433 = vst.msk [vmem:[%s422 + $0x79] sm:$0xff] %vm334, %v400
      %434 = vst.msk [vmem:[%s422 + $0x81] sm:$0xff] %vm334, %v401
      %435 = vst.msk [vmem:[%s422 + $0x91] sm:$0xff] %vm334, %v402
      %436 = vst.msk [vmem:[%s422 + $0x99] sm:$0xff] %vm334, %v403
      %437 = vst.msk [vmem:[%s422 + $0xa9] sm:$0xff] %vm334, %v404
      %438 = vst.msk [vmem:[%s422 + $0xb1] sm:$0xff] %vm334, %v405
      %439 = vst.msk [vmem:[%s422 + $0xc1] sm:$0xff] %vm334, %v406
      %440 = vst.msk [vmem:[%s422 + $0xc9] sm:$0xff] %vm334, %v407
      %441 = vst.msk [vmem:[%s422 + $0xd9] sm:$0xff] %vm334, %v408
      %442 = vst.msk [vmem:[%s422 + $0xe1] sm:$0xff] %vm334, %v409
      %443 = vst.msk [vmem:[%s422 + $0xf1] sm:$0xff] %vm334, %v410
      %444 = vst.msk [vmem:[%s422 + $0xf9] sm:$0xff] %vm334, %v411
      %445 = vst.msk [vmem:[%s422 + $0x109] sm:$0xff] %vm334, %v412
      %446 = vst.msk [vmem:[%s422 + $0x111] sm:$0xff] %vm334, %v413
      %447 = vst.msk [vmem:[%s422 + $0x121] sm:$0xff] %vm334, %v414
      %448 = vst.msk [vmem:[%s422 + $0x129] sm:$0xff] %vm334, %v415
      %449 = vst.msk [vmem:[%s422 + $0x139] sm:$0xff] %vm334, %v416
      %450 = vst.msk [vmem:[%s422 + $0x141] sm:$0xff] %vm334, %v417
      %451 = vst.msk [vmem:[%s422 + $0x151] sm:$0xff] %vm334, %v418
      %452 = vst.msk [vmem:[%s422 + $0x159] sm:$0xff] %vm334, %v419
      %453 = vst.msk [vmem:[%s422 + $0x169] sm:$0xff] %vm334, %v420
      %454 = vst.msk [vmem:[%s422 + $0x171] sm:$0xff] %vm334, %v421
      %v455 = vld [vmem:[#allocation2] sm:$0xff]
      %v456 = vld [vmem:[#allocation2 + $0x8] sm:$0xff]
      %v457 = vld [vmem:[#allocation2 + $0x10] sm:$0x3]
      %v458 = vld [vmem:[#allocation2 + $0x18] sm:$0xff]
      %v459 = vld [vmem:[#allocation2 + $0x20] sm:$0xff]
      %v460 = vld [vmem:[#allocation2 + $0x28] sm:$0x3]
      %v461 = vld [vmem:[#allocation2 + $0x30] sm:$0xff]
      %v462 = vld [vmem:[#allocation2 + $0x38] sm:$0xff]
      %v463 = vld [vmem:[#allocation2 + $0x40] sm:$0x3]
      %v464 = vld [vmem:[#allocation2 + $0x48] sm:$0xff]
      %v465 = vld [vmem:[#allocation2 + $0x50] sm:$0xff]
      %v466 = vld [vmem:[#allocation2 + $0x58] sm:$0x3]
      %v467 = vld [vmem:[#allocation2 + $0x60] sm:$0xff]
      %v468 = vld [vmem:[#allocation2 + $0x68] sm:$0xff]
      %v469 = vld [vmem:[#allocation2 + $0x70] sm:$0x3]
      %v470 = vld [vmem:[#allocation2 + $0x78] sm:$0xff]
      %v471 = vld [vmem:[#allocation2 + $0x80] sm:$0xff]
      %v472 = vld [vmem:[#allocation2 + $0x88] sm:$0x3]
      %v473 = vld [vmem:[#allocation2 + $0x90] sm:$0xff]
      %v474 = vld [vmem:[#allocation2 + $0x98] sm:$0xff]
      %v475 = vld [vmem:[#allocation2 + $0xa0] sm:$0x3]
      %v476 = vld [vmem:[#allocation2 + $0xa8] sm:$0xff]
      %v477 = vld [vmem:[#allocation2 + $0xb0] sm:$0xff]
      %v478 = vld [vmem:[#allocation2 + $0xb8] sm:$0x3]
      %v479 = vld [vmem:[#allocation2 + $0xc0] sm:$0xff]
      %v480 = vld [vmem:[#allocation2 + $0xc8] sm:$0xff]
      %v481 = vld [vmem:[#allocation2 + $0xd0] sm:$0x3]
      %v482 = vld [vmem:[#allocation2 + $0xd8] sm:$0xff]
      %v483 = vld [vmem:[#allocation2 + $0xe0] sm:$0xff]
      %v484 = vld [vmem:[#allocation2 + $0xe8] sm:$0x3]
      %v485 = vld [vmem:[#allocation2 + $0xf0] sm:$0xff]
      %v486 = vld [vmem:[#allocation2 + $0xf8] sm:$0xff]
      %v487 = vld [vmem:[#allocation2 + $0x100] sm:$0x3]
      %v488 = vld [vmem:[#allocation2 + $0x108] sm:$0xff]
      %v489 = vld [vmem:[#allocation2 + $0x110] sm:$0xff]
      %v490 = vld [vmem:[#allocation2 + $0x118] sm:$0x3]
      %v491 = vld [vmem:[#allocation2 + $0x120] sm:$0xff]
      %v492 = vld [vmem:[#allocation2 + $0x128] sm:$0xff]
      %v493 = vld [vmem:[#allocation2 + $0x130] sm:$0x3]
      %v494 = vld [vmem:[#allocation2 + $0x138] sm:$0xff]
      %v495 = vld [vmem:[#allocation2 + $0x140] sm:$0xff]
      %v496 = vld [vmem:[#allocation2 + $0x148] sm:$0x3]
      %v497 = vld [vmem:[#allocation2 + $0x150] sm:$0xff]
      %v498 = vld [vmem:[#allocation2 + $0x158] sm:$0xff]
      %v499 = vld [vmem:[#allocation2 + $0x160] sm:$0x3]
      %v500 = vld [vmem:[#allocation2 + $0x168] sm:$0xff]
      %v501 = vld [vmem:[#allocation2 + $0x170] sm:$0xff]
      %v502 = vld [vmem:[#allocation2 + $0x178] sm:$0x3]
      %v503 = vld [vmem:[#allocation2 + $0x180] sm:$0xff]
      %v504 = vld [vmem:[#allocation2 + $0x188] sm:$0xff]
      %v505 = vld [vmem:[#allocation2 + $0x190] sm:$0x3]
      %v506 = vld [vmem:[#allocation2 + $0x198] sm:$0xff]
      %v507 = vld [vmem:[#allocation2 + $0x1a0] sm:$0xff]
      %v508 = vld [vmem:[#allocation2 + $0x1a8] sm:$0x3]
      %v509 = vld [vmem:[%s1] sm:$0x1]
      %v510 = vlaneseq
      %v511 = vshrl.u32 %v510, 7
      %v512 = vsub.s32 0, %v511
      %v513 = vrot.slane %v509, %v512
      %v514 = vmul.f32 %v455, %v513
      %v515 = vmul.f32 %v456, %v513
      %v516 = vmul.f32 %v458, %v513
      %v517 = vmul.f32 %v459, %v513
      %v518 = vmul.f32 %v461, %v513
      %v519 = vmul.f32 %v462, %v513
      %v520 = vmul.f32 %v464, %v513
      %v521 = vmul.f32 %v465, %v513
      %v522 = vmul.f32 %v467, %v513
      %v523 = vmul.f32 %v468, %v513
      %v524 = vmul.f32 %v470, %v513
      %v525 = vmul.f32 %v471, %v513
      %v526 = vmul.f32 %v473, %v513
      %v527 = vmul.f32 %v474, %v513
      %v528 = vmul.f32 %v476, %v513
      %v529 = vmul.f32 %v477, %v513
      %v530 = vmul.f32 %v479, %v513
      %v531 = vmul.f32 %v480, %v513
      %v532 = vmul.f32 %v482, %v513
      %v533 = vmul.f32 %v483, %v513
      %v534 = vmul.f32 %v485, %v513
      %v535 = vmul.f32 %v486, %v513
      %v536 = vmul.f32 %v488, %v513
      %v537 = vmul.f32 %v489, %v513
      %v538 = vmul.f32 %v491, %v513
      %v539 = vmul.f32 %v492, %v513
      %v540 = vmul.f32 %v494, %v513
      %v541 = vmul.f32 %v495, %v513
      %v542 = vmul.f32 %v497, %v513
      %v543 = vmul.f32 %v498, %v513
      %v544 = vmul.f32 %v500, %v513
      %v545 = vmul.f32 %v501, %v513
      %v546 = vadd.f32 %v514, 0.0
      %v547 = vadd.f32 %v515, 0.0
      %v548 = vadd.f32 %v516, 0.0
      %v549 = vadd.f32 %v517, 0.0
      %v550 = vadd.f32 %v518, 0.0
      %v551 = vadd.f32 %v519, 0.0
      %v552 = vadd.f32 %v520, 0.0
      %v553 = vadd.f32 %v521, 0.0
      %v554 = vadd.f32 %v522, 0.0
      %v555 = vadd.f32 %v523, 0.0
      %v556 = vadd.f32 %v524, 0.0
      %v557 = vadd.f32 %v525, 0.0
      %v558 = vadd.f32 %v526, 0.0
      %v559 = vadd.f32 %v527, 0.0
      %v560 = vadd.f32 %v528, 0.0
      %v561 = vadd.f32 %v529, 0.0
      %v562 = vadd.f32 %v530, 0.0
      %v563 = vadd.f32 %v531, 0.0
      %v564 = vadd.f32 %v532, 0.0
      %v565 = vadd.f32 %v533, 0.0
      %v566 = vadd.f32 %v534, 0.0
      %v567 = vadd.f32 %v535, 0.0
      %v568 = vadd.f32 %v536, 0.0
      %v569 = vadd.f32 %v537, 0.0
      %v570 = vadd.f32 %v538, 0.0
      %v571 = vadd.f32 %v539, 0.0
      %v572 = vadd.f32 %v540, 0.0
      %v573 = vadd.f32 %v541, 0.0
      %v574 = vadd.f32 %v542, 0.0
      %v575 = vadd.f32 %v543, 0.0
      %v576 = vadd.f32 %v544, 0.0
      %v577 = vadd.f32 %v545, 0.0
      %v578 = vld [vmem:[%s1 + $0x1] sm:$0x1]
      %v579 = vlaneseq
      %v580 = vshrl.u32 %v579, 7
      %v581 = vsub.s32 0, %v580
      %v582 = vrot.slane %v578, %v581
      %v583 = vmul.f32 %v455, %v582
      %v584 = vmul.f32 %v456, %v582
      %v585 = vmul.f32 %v457, %v582
      %v586 = vmul.f32 %v458, %v582
      %v587 = vmul.f32 %v459, %v582
      %v588 = vmul.f32 %v460, %v582
      %v589 = vmul.f32 %v461, %v582
      %v590 = vmul.f32 %v462, %v582
      %v591 = vmul.f32 %v463, %v582
      %v592 = vmul.f32 %v464, %v582
      %v593 = vmul.f32 %v465, %v582
      %v594 = vmul.f32 %v466, %v582
      %v595 = vmul.f32 %v467, %v582
      %v596 = vmul.f32 %v468, %v582
      %v597 = vmul.f32 %v469, %v582
      %v598 = vmul.f32 %v470, %v582
      %v599 = vmul.f32 %v471, %v582
      %v600 = vmul.f32 %v472, %v582
      %v601 = vmul.f32 %v473, %v582
      %v602 = vmul.f32 %v474, %v582
      %v603 = vmul.f32 %v475, %v582
      %v604 = vmul.f32 %v476, %v582
      %v605 = vmul.f32 %v477, %v582
      %v606 = vmul.f32 %v478, %v582
      %v607 = vmul.f32 %v479, %v582
      %v608 = vmul.f32 %v480, %v582
      %v609 = vmul.f32 %v481, %v582
      %v610 = vmul.f32 %v482, %v582
      %v611 = vmul.f32 %v483, %v582
      %v612 = vmul.f32 %v484, %v582
      %v613 = vmul.f32 %v485, %v582
      %v614 = vmul.f32 %v486, %v582
      %v615 = vmul.f32 %v487, %v582
      %v616 = vmul.f32 %v488, %v582
      %v617 = vmul.f32 %v489, %v582
      %v618 = vmul.f32 %v490, %v582
      %v619 = vmul.f32 %v491, %v582
      %v620 = vmul.f32 %v492, %v582
      %v621 = vmul.f32 %v493, %v582
      %v622 = vmul.f32 %v494, %v582
      %v623 = vmul.f32 %v495, %v582
      %v624 = vmul.f32 %v496, %v582
      %v625 = vmul.f32 %v497, %v582
      %v626 = vmul.f32 %v498, %v582
      %v627 = vmul.f32 %v499, %v582
      %v628 = vmul.f32 %v500, %v582
      %v629 = vmul.f32 %v501, %v582
      %v630 = vmul.f32 %v502, %v582
      %vm679 = vcmask 1046528
      %v680 = vrot.slane %v583, 1
      %v681 = vrot.slane %v584, 1
      %v682 = vsel %vm679, %v680, %v681
      %v683 = vrot.slane %v585, 1
      %v684 = vsel %vm679, %v681, %v683
      %v685 = vrot.slane %v586, 1
      %v686 = vrot.slane %v587, 1
      %v687 = vsel %vm679, %v685, %v686
      %v688 = vrot.slane %v588, 1
      %v689 = vsel %vm679, %v686, %v688
      %v690 = vrot.slane %v589, 1
      %v691 = vrot.slane %v590, 1
      %v692 = vsel %vm679, %v690, %v691
      %v693 = vrot.slane %v591, 1
      %v694 = vsel %vm679, %v691, %v693
      %v695 = vrot.slane %v592, 1
      %v696 = vrot.slane %v593, 1
      %v697 = vsel %vm679, %v695, %v696
      %v698 = vrot.slane %v594, 1
      %v699 = vsel %vm679, %v696, %v698
      %v700 = vrot.slane %v595, 1
      %v701 = vrot.slane %v596, 1
      %v702 = vsel %vm679, %v700, %v701
      %v703 = vrot.slane %v597, 1
      %v704 = vsel %vm679, %v701, %v703
      %v705 = vrot.slane %v598, 1
      %v706 = vrot.slane %v599, 1
      %v707 = vsel %vm679, %v705, %v706
      %v708 = vrot.slane %v600, 1
      %v709 = vsel %vm679, %v706, %v708
      %v710 = vrot.slane %v601, 1
      %v711 = vrot.slane %v602, 1
      %v712 = vsel %vm679, %v710, %v711
      %v713 = vrot.slane %v603, 1
      %v714 = vsel %vm679, %v711, %v713
      %v715 = vrot.slane %v604, 1
      %v716 = vrot.slane %v605, 1
      %v717 = vsel %vm679, %v715, %v716
      %v718 = vrot.slane %v606, 1
      %v719 = vsel %vm679, %v716, %v718
      %v720 = vrot.slane %v607, 1
      %v721 = vrot.slane %v608, 1
      %v722 = vsel %vm679, %v720, %v721
      %v723 = vrot.slane %v609, 1
      %v724 = vsel %vm679, %v721, %v723
      %v725 = vrot.slane %v610, 1
      %v726 = vrot.slane %v611, 1
      %v727 = vsel %vm679, %v725, %v726
      %v728 = vrot.slane %v612, 1
      %v729 = vsel %vm679, %v726, %v728
      %v730 = vrot.slane %v613, 1
      %v731 = vrot.slane %v614, 1
      %v732 = vsel %vm679, %v730, %v731
      %v733 = vrot.slane %v615, 1
      %v734 = vsel %vm679, %v731, %v733
      %v735 = vrot.slane %v616, 1
      %v736 = vrot.slane %v617, 1
      %v737 = vsel %vm679, %v735, %v736
      %v738 = vrot.slane %v618, 1
      %v739 = vsel %vm679, %v736, %v738
      %v740 = vrot.slane %v619, 1
      %v741 = vrot.slane %v620, 1
      %v742 = vsel %vm679, %v740, %v741
      %v743 = vrot.slane %v621, 1
      %v744 = vsel %vm679, %v741, %v743
      %v745 = vrot.slane %v622, 1
      %v746 = vrot.slane %v623, 1
      %v747 = vsel %vm679, %v745, %v746
      %v748 = vrot.slane %v624, 1
      %v749 = vsel %vm679, %v746, %v748
      %v750 = vrot.slane %v625, 1
      %v751 = vrot.slane %v626, 1
      %v752 = vsel %vm679, %v750, %v751
      %v753 = vrot.slane %v627, 1
      %v754 = vsel %vm679, %v751, %v753
      %v755 = vrot.slane %v628, 1
      %v756 = vrot.slane %v629, 1
      %v757 = vsel %vm679, %v755, %v756
      %v758 = vrot.slane %v630, 1
      %v759 = vsel %vm679, %v756, %v758
      %v792 = vadd.f32 %v546, %v682
      %v793 = vadd.f32 %v547, %v684
      %v794 = vadd.f32 %v548, %v687
      %v795 = vadd.f32 %v549, %v689
      %v796 = vadd.f32 %v550, %v692
      %v797 = vadd.f32 %v551, %v694
      %v798 = vadd.f32 %v552, %v697
      %v799 = vadd.f32 %v553, %v699
      %v800 = vadd.f32 %v554, %v702
      %v801 = vadd.f32 %v555, %v704
      %v802 = vadd.f32 %v556, %v707
      %v803 = vadd.f32 %v557, %v709
      %v804 = vadd.f32 %v558, %v712
      %v805 = vadd.f32 %v559, %v714
      %v806 = vadd.f32 %v560, %v717
      %v807 = vadd.f32 %v561, %v719
      %v808 = vadd.f32 %v562, %v722
      %v809 = vadd.f32 %v563, %v724
      %v810 = vadd.f32 %v564, %v727
      %v811 = vadd.f32 %v565, %v729
      %v812 = vadd.f32 %v566, %v732
      %v813 = vadd.f32 %v567, %v734
      %v814 = vadd.f32 %v568, %v737
      %v815 = vadd.f32 %v569, %v739
      %v816 = vadd.f32 %v570, %v742
      %v817 = vadd.f32 %v571, %v744
      %v818 = vadd.f32 %v572, %v747
      %v819 = vadd.f32 %v573, %v749
      %v820 = vadd.f32 %v574, %v752
      %v821 = vadd.f32 %v575, %v754
      %v822 = vadd.f32 %v576, %v757
      %v823 = vadd.f32 %v577, %v759
      %v824 = vld [vmem:[%s1 + $0x2] sm:$0x1]
      %v825 = vlaneseq
      %v826 = vshrl.u32 %v825, 7
      %v827 = vsub.s32 0, %v826
      %v828 = vrot.slane %v824, %v827
      %v829 = vmul.f32 %v455, %v828
      %v830 = vmul.f32 %v456, %v828
      %v831 = vmul.f32 %v457, %v828
      %v832 = vmul.f32 %v458, %v828
      %v833 = vmul.f32 %v459, %v828
      %v834 = vmul.f32 %v460, %v828
      %v835 = vmul.f32 %v461, %v828
      %v836 = vmul.f32 %v462, %v828
      %v837 = vmul.f32 %v463, %v828
      %v838 = vmul.f32 %v464, %v828
      %v839 = vmul.f32 %v465, %v828
      %v840 = vmul.f32 %v466, %v828
      %v841 = vmul.f32 %v467, %v828
      %v842 = vmul.f32 %v468, %v828
      %v843 = vmul.f32 %v469, %v828
      %v844 = vmul.f32 %v470, %v828
      %v845 = vmul.f32 %v471, %v828
      %v846 = vmul.f32 %v472, %v828
      %v847 = vmul.f32 %v473, %v828
      %v848 = vmul.f32 %v474, %v828
      %v849 = vmul.f32 %v475, %v828
      %v850 = vmul.f32 %v476, %v828
      %v851 = vmul.f32 %v477, %v828
      %v852 = vmul.f32 %v478, %v828
      %v853 = vmul.f32 %v479, %v828
      %v854 = vmul.f32 %v480, %v828
      %v855 = vmul.f32 %v481, %v828
      %v856 = vmul.f32 %v482, %v828
      %v857 = vmul.f32 %v483, %v828
      %v858 = vmul.f32 %v484, %v828
      %v859 = vmul.f32 %v485, %v828
      %v860 = vmul.f32 %v486, %v828
      %v861 = vmul.f32 %v487, %v828
      %v862 = vmul.f32 %v488, %v828
      %v863 = vmul.f32 %v489, %v828
      %v864 = vmul.f32 %v490, %v828
      %v865 = vmul.f32 %v491, %v828
      %v866 = vmul.f32 %v492, %v828
      %v867 = vmul.f32 %v493, %v828
      %v868 = vmul.f32 %v494, %v828
      %v869 = vmul.f32 %v495, %v828
      %v870 = vmul.f32 %v496, %v828
      %v871 = vmul.f32 %v497, %v828
      %v872 = vmul.f32 %v498, %v828
      %v873 = vmul.f32 %v499, %v828
      %v874 = vmul.f32 %v500, %v828
      %v875 = vmul.f32 %v501, %v828
      %v876 = vmul.f32 %v502, %v828
      %vm925 = vcmask 1045504
      %v926 = vrot.slane %v829, 2
      %v927 = vrot.slane %v830, 2
      %v928 = vsel %vm925, %v926, %v927
      %v929 = vrot.slane %v831, 2
      %v930 = vsel %vm925, %v927, %v929
      %v931 = vrot.slane %v832, 2
      %v932 = vrot.slane %v833, 2
      %v933 = vsel %vm925, %v931, %v932
      %v934 = vrot.slane %v834, 2
      %v935 = vsel %vm925, %v932, %v934
      %v936 = vrot.slane %v835, 2
      %v937 = vrot.slane %v836, 2
      %v938 = vsel %vm925, %v936, %v937
      %v939 = vrot.slane %v837, 2
      %v940 = vsel %vm925, %v937, %v939
      %v941 = vrot.slane %v838, 2
      %v942 = vrot.slane %v839, 2
      %v943 = vsel %vm925, %v941, %v942
      %v944 = vrot.slane %v840, 2
      %v945 = vsel %vm925, %v942, %v944
      %v946 = vrot.slane %v841, 2
      %v947 = vrot.slane %v842, 2
      %v948 = vsel %vm925, %v946, %v947
      %v949 = vrot.slane %v843, 2
      %v950 = vsel %vm925, %v947, %v949
      %v951 = vrot.slane %v844, 2
      %v952 = vrot.slane %v845, 2
      %v953 = vsel %vm925, %v951, %v952
      %v954 = vrot.slane %v846, 2
      %v955 = vsel %vm925, %v952, %v954
      %v956 = vrot.slane %v847, 2
      %v957 = vrot.slane %v848, 2
      %v958 = vsel %vm925, %v956, %v957
      %v959 = vrot.slane %v849, 2
      %v960 = vsel %vm925, %v957, %v959
      %v961 = vrot.slane %v850, 2
      %v962 = vrot.slane %v851, 2
      %v963 = vsel %vm925, %v961, %v962
      %v964 = vrot.slane %v852, 2
      %v965 = vsel %vm925, %v962, %v964
      %v966 = vrot.slane %v853, 2
      %v967 = vrot.slane %v854, 2
      %v968 = vsel %vm925, %v966, %v967
      %v969 = vrot.slane %v855, 2
      %v970 = vsel %vm925, %v967, %v969
      %v971 = vrot.slane %v856, 2
      %v972 = vrot.slane %v857, 2
      %v973 = vsel %vm925, %v971, %v972
      %v974 = vrot.slane %v858, 2
      %v975 = vsel %vm925, %v972, %v974
      %v976 = vrot.slane %v859, 2
      %v977 = vrot.slane %v860, 2
      %v978 = vsel %vm925, %v976, %v977
      %v979 = vrot.slane %v861, 2
      %v980 = vsel %vm925, %v977, %v979
      %v981 = vrot.slane %v862, 2
      %v982 = vrot.slane %v863, 2
      %v983 = vsel %vm925, %v981, %v982
      %v984 = vrot.slane %v864, 2
      %v985 = vsel %vm925, %v982, %v984
      %v986 = vrot.slane %v865, 2
      %v987 = vrot.slane %v866, 2
      %v988 = vsel %vm925, %v986, %v987
      %v989 = vrot.slane %v867, 2
      %v990 = vsel %vm925, %v987, %v989
      %v991 = vrot.slane %v868, 2
      %v992 = vrot.slane %v869, 2
      %v993 = vsel %vm925, %v991, %v992
      %v994 = vrot.slane %v870, 2
      %v995 = vsel %vm925, %v992, %v994
      %v996 = vrot.slane %v871, 2
      %v997 = vrot.slane %v872, 2
      %v998 = vsel %vm925, %v996, %v997
      %v999 = vrot.slane %v873, 2
      %v1000 = vsel %vm925, %v997, %v999
      %v1001 = vrot.slane %v874, 2
      %v1002 = vrot.slane %v875, 2
      %v1003 = vsel %vm925, %v1001, %v1002
      %v1004 = vrot.slane %v876, 2
      %v1005 = vsel %vm925, %v1002, %v1004
      %v1038 = vadd.f32 %v792, %v928
      %v1039 = vadd.f32 %v793, %v930
      %v1040 = vadd.f32 %v794, %v933
      %v1041 = vadd.f32 %v795, %v935
      %v1042 = vadd.f32 %v796, %v938
      %v1043 = vadd.f32 %v797, %v940
      %v1044 = vadd.f32 %v798, %v943
      %v1045 = vadd.f32 %v799, %v945
      %v1046 = vadd.f32 %v800, %v948
      %v1047 = vadd.f32 %v801, %v950
      %v1048 = vadd.f32 %v802, %v953
      %v1049 = vadd.f32 %v803, %v955
      %v1050 = vadd.f32 %v804, %v958
      %v1051 = vadd.f32 %v805, %v960
      %v1052 = vadd.f32 %v806, %v963
      %v1053 = vadd.f32 %v807, %v965
      %v1054 = vadd.f32 %v808, %v968
      %v1055 = vadd.f32 %v809, %v970
      %v1056 = vadd.f32 %v810, %v973
      %v1057 = vadd.f32 %v811, %v975
      %v1058 = vadd.f32 %v812, %v978
      %v1059 = vadd.f32 %v813, %v980
      %v1060 = vadd.f32 %v814, %v983
      %v1061 = vadd.f32 %v815, %v985
      %v1062 = vadd.f32 %v816, %v988
      %v1063 = vadd.f32 %v817, %v990
      %v1064 = vadd.f32 %v818, %v993
      %v1065 = vadd.f32 %v819, %v995
      %v1066 = vadd.f32 %v820, %v998
      %v1067 = vadd.f32 %v821, %v1000
      %v1068 = vadd.f32 %v822, %v1003
      %v1069 = vadd.f32 %v823, %v1005
      %s1070 = scalar_lea.vmem %s1, 4
      %v1071 = vld [vmem:[%s1070] sm:$0x1]
      %v1072 = vlaneseq
      %v1073 = vshrl.u32 %v1072, 7
      %v1074 = vsub.s32 0, %v1073
      %v1075 = vrot.slane %v1071, %v1074
      %v1076 = vmul.f32 %v458, %v1075
      %v1077 = vmul.f32 %v459, %v1075
      %v1078 = vmul.f32 %v461, %v1075
      %v1079 = vmul.f32 %v462, %v1075
      %v1080 = vmul.f32 %v464, %v1075
      %v1081 = vmul.f32 %v465, %v1075
      %v1082 = vmul.f32 %v467, %v1075
      %v1083 = vmul.f32 %v468, %v1075
      %v1084 = vmul.f32 %v470, %v1075
      %v1085 = vmul.f32 %v471, %v1075
      %v1086 = vmul.f32 %v473, %v1075
      %v1087 = vmul.f32 %v474, %v1075
      %v1088 = vmul.f32 %v476, %v1075
      %v1089 = vmul.f32 %v477, %v1075
      %v1090 = vmul.f32 %v479, %v1075
      %v1091 = vmul.f32 %v480, %v1075
      %v1092 = vmul.f32 %v482, %v1075
      %v1093 = vmul.f32 %v483, %v1075
      %v1094 = vmul.f32 %v485, %v1075
      %v1095 = vmul.f32 %v486, %v1075
      %v1096 = vmul.f32 %v488, %v1075
      %v1097 = vmul.f32 %v489, %v1075
      %v1098 = vmul.f32 %v491, %v1075
      %v1099 = vmul.f32 %v492, %v1075
      %v1100 = vmul.f32 %v494, %v1075
      %v1101 = vmul.f32 %v495, %v1075
      %v1102 = vmul.f32 %v497, %v1075
      %v1103 = vmul.f32 %v498, %v1075
      %v1104 = vmul.f32 %v500, %v1075
      %v1105 = vmul.f32 %v501, %v1075
      %v1106 = vmul.f32 %v503, %v1075
      %v1107 = vmul.f32 %v504, %v1075
      %v1108 = vadd.f32 %v1038, %v1076
      %v1109 = vadd.f32 %v1039, %v1077
      %v1110 = vadd.f32 %v1040, %v1078
      %v1111 = vadd.f32 %v1041, %v1079
      %v1112 = vadd.f32 %v1042, %v1080
      %v1113 = vadd.f32 %v1043, %v1081
      %v1114 = vadd.f32 %v1044, %v1082
      %v1115 = vadd.f32 %v1045, %v1083
      %v1116 = vadd.f32 %v1046, %v1084
      %v1117 = vadd.f32 %v1047, %v1085
      %v1118 = vadd.f32 %v1048, %v1086
      %v1119 = vadd.f32 %v1049, %v1087
      %v1120 = vadd.f32 %v1050, %v1088
      %v1121 = vadd.f32 %v1051, %v1089
      %v1122 = vadd.f32 %v1052, %v1090
      %v1123 = vadd.f32 %v1053, %v1091
      %v1124 = vadd.f32 %v1054, %v1092
      %v1125 = vadd.f32 %v1055, %v1093
      %v1126 = vadd.f32 %v1056, %v1094
      %v1127 = vadd.f32 %v1057, %v1095
      %v1128 = vadd.f32 %v1058, %v1096
      %v1129 = vadd.f32 %v1059, %v1097
      %v1130 = vadd.f32 %v1060, %v1098
      %v1131 = vadd.f32 %v1061, %v1099
      %v1132 = vadd.f32 %v1062, %v1100
      %v1133 = vadd.f32 %v1063, %v1101
      %v1134 = vadd.f32 %v1064, %v1102
      %v1135 = vadd.f32 %v1065, %v1103
      %v1136 = vadd.f32 %v1066, %v1104
      %v1137 = vadd.f32 %v1067, %v1105
      %v1138 = vadd.f32 %v1068, %v1106
      %v1139 = vadd.f32 %v1069, %v1107
      %v1140 = vld [vmem:[%s1070 + $0x1] sm:$0x1]
      %v1141 = vlaneseq
      %v1142 = vshrl.u32 %v1141, 7
      %v1143 = vsub.s32 0, %v1142
      %v1144 = vrot.slane %v1140, %v1143
      %v1145 = vmul.f32 %v458, %v1144
      %v1146 = vmul.f32 %v459, %v1144
      %v1147 = vmul.f32 %v460, %v1144
      %v1148 = vmul.f32 %v461, %v1144
      %v1149 = vmul.f32 %v462, %v1144
      %v1150 = vmul.f32 %v463, %v1144
      %v1151 = vmul.f32 %v464, %v1144
      %v1152 = vmul.f32 %v465, %v1144
      %v1153 = vmul.f32 %v466, %v1144
      %v1154 = vmul.f32 %v467, %v1144
      %v1155 = vmul.f32 %v468, %v1144
      %v1156 = vmul.f32 %v469, %v1144
      %v1157 = vmul.f32 %v470, %v1144
      %v1158 = vmul.f32 %v471, %v1144
      %v1159 = vmul.f32 %v472, %v1144
      %v1160 = vmul.f32 %v473, %v1144
      %v1161 = vmul.f32 %v474, %v1144
      %v1162 = vmul.f32 %v475, %v1144
      %v1163 = vmul.f32 %v476, %v1144
      %v1164 = vmul.f32 %v477, %v1144
      %v1165 = vmul.f32 %v478, %v1144
      %v1166 = vmul.f32 %v479, %v1144
      %v1167 = vmul.f32 %v480, %v1144
      %v1168 = vmul.f32 %v481, %v1144
      %v1169 = vmul.f32 %v482, %v1144
      %v1170 = vmul.f32 %v483, %v1144
      %v1171 = vmul.f32 %v484, %v1144
      %v1172 = vmul.f32 %v485, %v1144
      %v1173 = vmul.f32 %v486, %v1144
      %v1174 = vmul.f32 %v487, %v1144
      %v1175 = vmul.f32 %v488, %v1144
      %v1176 = vmul.f32 %v489, %v1144
      %v1177 = vmul.f32 %v490, %v1144
      %v1178 = vmul.f32 %v491, %v1144
      %v1179 = vmul.f32 %v492, %v1144
      %v1180 = vmul.f32 %v493, %v1144
      %v1181 = vmul.f32 %v494, %v1144
      %v1182 = vmul.f32 %v495, %v1144
      %v1183 = vmul.f32 %v496, %v1144
      %v1184 = vmul.f32 %v497, %v1144
      %v1185 = vmul.f32 %v498, %v1144
      %v1186 = vmul.f32 %v499, %v1144
      %v1187 = vmul.f32 %v500, %v1144
      %v1188 = vmul.f32 %v501, %v1144
      %v1189 = vmul.f32 %v502, %v1144
      %v1190 = vmul.f32 %v503, %v1144
      %v1191 = vmul.f32 %v504, %v1144
      %v1192 = vmul.f32 %v505, %v1144
      %v1241 = vrot.slane %v1145, 1
      %v1242 = vrot.slane %v1146, 1
      %v1243 = vsel %vm679, %v1241, %v1242
      %v1244 = vrot.slane %v1147, 1
      %v1245 = vsel %vm679, %v1242, %v1244
      %v1246 = vrot.slane %v1148, 1
      %v1247 = vrot.slane %v1149, 1
      %v1248 = vsel %vm679, %v1246, %v1247
      %v1249 = vrot.slane %v1150, 1
      %v1250 = vsel %vm679, %v1247, %v1249
      %v1251 = vrot.slane %v1151, 1
      %v1252 = vrot.slane %v1152, 1
      %v1253 = vsel %vm679, %v1251, %v1252
      %v1254 = vrot.slane %v1153, 1
      %v1255 = vsel %vm679, %v1252, %v1254
      %v1256 = vrot.slane %v1154, 1
      %v1257 = vrot.slane %v1155, 1
      %v1258 = vsel %vm679, %v1256, %v1257
      %v1259 = vrot.slane %v1156, 1
      %v1260 = vsel %vm679, %v1257, %v1259
      %v1261 = vrot.slane %v1157, 1
      %v1262 = vrot.slane %v1158, 1
      %v1263 = vsel %vm679, %v1261, %v1262
      %v1264 = vrot.slane %v1159, 1
      %v1265 = vsel %vm679, %v1262, %v1264
      %v1266 = vrot.slane %v1160, 1
      %v1267 = vrot.slane %v1161, 1
      %v1268 = vsel %vm679, %v1266, %v1267
      %v1269 = vrot.slane %v1162, 1
      %v1270 = vsel %vm679, %v1267, %v1269
      %v1271 = vrot.slane %v1163, 1
      %v1272 = vrot.slane %v1164, 1
      %v1273 = vsel %vm679, %v1271, %v1272
      %v1274 = vrot.slane %v1165, 1
      %v1275 = vsel %vm679, %v1272, %v1274
      %v1276 = vrot.slane %v1166, 1
      %v1277 = vrot.slane %v1167, 1
      %v1278 = vsel %vm679, %v1276, %v1277
      %v1279 = vrot.slane %v1168, 1
      %v1280 = vsel %vm679, %v1277, %v1279
      %v1281 = vrot.slane %v1169, 1
      %v1282 = vrot.slane %v1170, 1
      %v1283 = vsel %vm679, %v1281, %v1282
      %v1284 = vrot.slane %v1171, 1
      %v1285 = vsel %vm679, %v1282, %v1284
      %v1286 = vrot.slane %v1172, 1
      %v1287 = vrot.slane %v1173, 1
      %v1288 = vsel %vm679, %v1286, %v1287
      %v1289 = vrot.slane %v1174, 1
      %v1290 = vsel %vm679, %v1287, %v1289
      %v1291 = vrot.slane %v1175, 1
      %v1292 = vrot.slane %v1176, 1
      %v1293 = vsel %vm679, %v1291, %v1292
      %v1294 = vrot.slane %v1177, 1
      %v1295 = vsel %vm679, %v1292, %v1294
      %v1296 = vrot.slane %v1178, 1
      %v1297 = vrot.slane %v1179, 1
      %v1298 = vsel %vm679, %v1296, %v1297
      %v1299 = vrot.slane %v1180, 1
      %v1300 = vsel %vm679, %v1297, %v1299
      %v1301 = vrot.slane %v1181, 1
      %v1302 = vrot.slane %v1182, 1
      %v1303 = vsel %vm679, %v1301, %v1302
      %v1304 = vrot.slane %v1183, 1
      %v1305 = vsel %vm679, %v1302, %v1304
      %v1306 = vrot.slane %v1184, 1
      %v1307 = vrot.slane %v1185, 1
      %v1308 = vsel %vm679, %v1306, %v1307
      %v1309 = vrot.slane %v1186, 1
      %v1310 = vsel %vm679, %v1307, %v1309
      %v1311 = vrot.slane %v1187, 1
      %v1312 = vrot.slane %v1188, 1
      %v1313 = vsel %vm679, %v1311, %v1312
      %v1314 = vrot.slane %v1189, 1
      %v1315 = vsel %vm679, %v1312, %v1314
      %v1316 = vrot.slane %v1190, 1
      %v1317 = vrot.slane %v1191, 1
      %v1318 = vsel %vm679, %v1316, %v1317
      %v1319 = vrot.slane %v1192, 1
      %v1320 = vsel %vm679, %v1317, %v1319
      %v1353 = vadd.f32 %v1108, %v1243
      %v1354 = vadd.f32 %v1109, %v1245
      %v1355 = vadd.f32 %v1110, %v1248
      %v1356 = vadd.f32 %v1111, %v1250
      %v1357 = vadd.f32 %v1112, %v1253
      %v1358 = vadd.f32 %v1113, %v1255
      %v1359 = vadd.f32 %v1114, %v1258
      %v1360 = vadd.f32 %v1115, %v1260
      %v1361 = vadd.f32 %v1116, %v1263
      %v1362 = vadd.f32 %v1117, %v1265
      %v1363 = vadd.f32 %v1118, %v1268
      %v1364 = vadd.f32 %v1119, %v1270
      %v1365 = vadd.f32 %v1120, %v1273
      %v1366 = vadd.f32 %v1121, %v1275
      %v1367 = vadd.f32 %v1122, %v1278
      %v1368 = vadd.f32 %v1123, %v1280
      %v1369 = vadd.f32 %v1124, %v1283
      %v1370 = vadd.f32 %v1125, %v1285
      %v1371 = vadd.f32 %v1126, %v1288
      %v1372 = vadd.f32 %v1127, %v1290
      %v1373 = vadd.f32 %v1128, %v1293
      %v1374 = vadd.f32 %v1129, %v1295
      %v1375 = vadd.f32 %v1130, %v1298
      %v1376 = vadd.f32 %v1131, %v1300
      %v1377 = vadd.f32 %v1132, %v1303
      %v1378 = vadd.f32 %v1133, %v1305
      %v1379 = vadd.f32 %v1134, %v1308
      %v1380 = vadd.f32 %v1135, %v1310
      %v1381 = vadd.f32 %v1136, %v1313
      %v1382 = vadd.f32 %v1137, %v1315
      %v1383 = vadd.f32 %v1138, %v1318
      %v1384 = vadd.f32 %v1139, %v1320
      %v1385 = vld [vmem:[%s1070 + $0x2] sm:$0x1]
      %v1386 = vlaneseq
      %v1387 = vshrl.u32 %v1386, 7
      %v1388 = vsub.s32 0, %v1387
      %v1389 = vrot.slane %v1385, %v1388
      %v1390 = vmul.f32 %v458, %v1389
      %v1391 = vmul.f32 %v459, %v1389
      %v1392 = vmul.f32 %v460, %v1389
      %v1393 = vmul.f32 %v461, %v1389
      %v1394 = vmul.f32 %v462, %v1389
      %v1395 = vmul.f32 %v463, %v1389
      %v1396 = vmul.f32 %v464, %v1389
      %v1397 = vmul.f32 %v465, %v1389
      %v1398 = vmul.f32 %v466, %v1389
      %v1399 = vmul.f32 %v467, %v1389
      %v1400 = vmul.f32 %v468, %v1389
      %v1401 = vmul.f32 %v469, %v1389
      %v1402 = vmul.f32 %v470, %v1389
      %v1403 = vmul.f32 %v471, %v1389
      %v1404 = vmul.f32 %v472, %v1389
      %v1405 = vmul.f32 %v473, %v1389
      %v1406 = vmul.f32 %v474, %v1389
      %v1407 = vmul.f32 %v475, %v1389
      %v1408 = vmul.f32 %v476, %v1389
      %v1409 = vmul.f32 %v477, %v1389
      %v1410 = vmul.f32 %v478, %v1389
      %v1411 = vmul.f32 %v479, %v1389
      %v1412 = vmul.f32 %v480, %v1389
      %v1413 = vmul.f32 %v481, %v1389
      %v1414 = vmul.f32 %v482, %v1389
      %v1415 = vmul.f32 %v483, %v1389
      %v1416 = vmul.f32 %v484, %v1389
      %v1417 = vmul.f32 %v485, %v1389
      %v1418 = vmul.f32 %v486, %v1389
      %v1419 = vmul.f32 %v487, %v1389
      %v1420 = vmul.f32 %v488, %v1389
      %v1421 = vmul.f32 %v489, %v1389
      %v1422 = vmul.f32 %v490, %v1389
      %v1423 = vmul.f32 %v491, %v1389
      %v1424 = vmul.f32 %v492, %v1389
      %v1425 = vmul.f32 %v493, %v1389
      %v1426 = vmul.f32 %v494, %v1389
      %v1427 = vmul.f32 %v495, %v1389
      %v1428 = vmul.f32 %v496, %v1389
      %v1429 = vmul.f32 %v497, %v1389
      %v1430 = vmul.f32 %v498, %v1389
      %v1431 = vmul.f32 %v499, %v1389
      %v1432 = vmul.f32 %v500, %v1389
      %v1433 = vmul.f32 %v501, %v1389
      %v1434 = vmul.f32 %v502, %v1389
      %v1435 = vmul.f32 %v503, %v1389
      %v1436 = vmul.f32 %v504, %v1389
      %v1437 = vmul.f32 %v505, %v1389
      %v1486 = vrot.slane %v1390, 2
      %v1487 = vrot.slane %v1391, 2
      %v1488 = vsel %vm925, %v1486, %v1487
      %v1489 = vrot.slane %v1392, 2
      %v1490 = vsel %vm925, %v1487, %v1489
      %v1491 = vrot.slane %v1393, 2
      %v1492 = vrot.slane %v1394, 2
      %v1493 = vsel %vm925, %v1491, %v1492
      %v1494 = vrot.slane %v1395, 2
      %v1495 = vsel %vm925, %v1492, %v1494
      %v1496 = vrot.slane %v1396, 2
      %v1497 = vrot.slane %v1397, 2
      %v1498 = vsel %vm925, %v1496, %v1497
      %v1499 = vrot.slane %v1398, 2
      %v1500 = vsel %vm925, %v1497, %v1499
      %v1501 = vrot.slane %v1399, 2
      %v1502 = vrot.slane %v1400, 2
      %v1503 = vsel %vm925, %v1501, %v1502
      %v1504 = vrot.slane %v1401, 2
      %v1505 = vsel %vm925, %v1502, %v1504
      %v1506 = vrot.slane %v1402, 2
      %v1507 = vrot.slane %v1403, 2
      %v1508 = vsel %vm925, %v1506, %v1507
      %v1509 = vrot.slane %v1404, 2
      %v1510 = vsel %vm925, %v1507, %v1509
      %v1511 = vrot.slane %v1405, 2
      %v1512 = vrot.slane %v1406, 2
      %v1513 = vsel %vm925, %v1511, %v1512
      %v1514 = vrot.slane %v1407, 2
      %v1515 = vsel %vm925, %v1512, %v1514
      %v1516 = vrot.slane %v1408, 2
      %v1517 = vrot.slane %v1409, 2
      %v1518 = vsel %vm925, %v1516, %v1517
      %v1519 = vrot.slane %v1410, 2
      %v1520 = vsel %vm925, %v1517, %v1519
      %v1521 = vrot.slane %v1411, 2
      %v1522 = vrot.slane %v1412, 2
      %v1523 = vsel %vm925, %v1521, %v1522
      %v1524 = vrot.slane %v1413, 2
      %v1525 = vsel %vm925, %v1522, %v1524
      %v1526 = vrot.slane %v1414, 2
      %v1527 = vrot.slane %v1415, 2
      %v1528 = vsel %vm925, %v1526, %v1527
      %v1529 = vrot.slane %v1416, 2
      %v1530 = vsel %vm925, %v1527, %v1529
      %v1531 = vrot.slane %v1417, 2
      %v1532 = vrot.slane %v1418, 2
      %v1533 = vsel %vm925, %v1531, %v1532
      %v1534 = vrot.slane %v1419, 2
      %v1535 = vsel %vm925, %v1532, %v1534
      %v1536 = vrot.slane %v1420, 2
      %v1537 = vrot.slane %v1421, 2
      %v1538 = vsel %vm925, %v1536, %v1537
      %v1539 = vrot.slane %v1422, 2
      %v1540 = vsel %vm925, %v1537, %v1539
      %v1541 = vrot.slane %v1423, 2
      %v1542 = vrot.slane %v1424, 2
      %v1543 = vsel %vm925, %v1541, %v1542
      %v1544 = vrot.slane %v1425, 2
      %v1545 = vsel %vm925, %v1542, %v1544
      %v1546 = vrot.slane %v1426, 2
      %v1547 = vrot.slane %v1427, 2
      %v1548 = vsel %vm925, %v1546, %v1547
      %v1549 = vrot.slane %v1428, 2
      %v1550 = vsel %vm925, %v1547, %v1549
      %v1551 = vrot.slane %v1429, 2
      %v1552 = vrot.slane %v1430, 2
      %v1553 = vsel %vm925, %v1551, %v1552
      %v1554 = vrot.slane %v1431, 2
      %v1555 = vsel %vm925, %v1552, %v1554
      %v1556 = vrot.slane %v1432, 2
      %v1557 = vrot.slane %v1433, 2
      %v1558 = vsel %vm925, %v1556, %v1557
      %v1559 = vrot.slane %v1434, 2
      %v1560 = vsel %vm925, %v1557, %v1559
      %v1561 = vrot.slane %v1435, 2
      %v1562 = vrot.slane %v1436, 2
      %v1563 = vsel %vm925, %v1561, %v1562
      %v1564 = vrot.slane %v1437, 2
      %v1565 = vsel %vm925, %v1562, %v1564
      %v1598 = vadd.f32 %v1353, %v1488
      %v1599 = vadd.f32 %v1354, %v1490
      %v1600 = vadd.f32 %v1355, %v1493
      %v1601 = vadd.f32 %v1356, %v1495
      %v1602 = vadd.f32 %v1357, %v1498
      %v1603 = vadd.f32 %v1358, %v1500
      %v1604 = vadd.f32 %v1359, %v1503
      %v1605 = vadd.f32 %v1360, %v1505
      %v1606 = vadd.f32 %v1361, %v1508
      %v1607 = vadd.f32 %v1362, %v1510
      %v1608 = vadd.f32 %v1363, %v1513
      %v1609 = vadd.f32 %v1364, %v1515
      %v1610 = vadd.f32 %v1365, %v1518
      %v1611 = vadd.f32 %v1366, %v1520
      %v1612 = vadd.f32 %v1367, %v1523
      %v1613 = vadd.f32 %v1368, %v1525
      %v1614 = vadd.f32 %v1369, %v1528
      %v1615 = vadd.f32 %v1370, %v1530
      %v1616 = vadd.f32 %v1371, %v1533
      %v1617 = vadd.f32 %v1372, %v1535
      %v1618 = vadd.f32 %v1373, %v1538
      %v1619 = vadd.f32 %v1374, %v1540
      %v1620 = vadd.f32 %v1375, %v1543
      %v1621 = vadd.f32 %v1376, %v1545
      %v1622 = vadd.f32 %v1377, %v1548
      %v1623 = vadd.f32 %v1378, %v1550
      %v1624 = vadd.f32 %v1379, %v1553
      %v1625 = vadd.f32 %v1380, %v1555
      %v1626 = vadd.f32 %v1381, %v1558
      %v1627 = vadd.f32 %v1382, %v1560
      %v1628 = vadd.f32 %v1383, %v1563
      %v1629 = vadd.f32 %v1384, %v1565
      %s1630 = scalar_lea.vmem %s1, 8
      %v1631 = vld [vmem:[%s1630] sm:$0x1]
      %v1632 = vlaneseq
      %v1633 = vshrl.u32 %v1632, 7
      %v1634 = vsub.s32 0, %v1633
      %v1635 = vrot.slane %v1631, %v1634
      %v1636 = vmul.f32 %v461, %v1635
      %v1637 = vmul.f32 %v462, %v1635
      %v1638 = vmul.f32 %v464, %v1635
      %v1639 = vmul.f32 %v465, %v1635
      %v1640 = vmul.f32 %v467, %v1635
      %v1641 = vmul.f32 %v468, %v1635
      %v1642 = vmul.f32 %v470, %v1635
      %v1643 = vmul.f32 %v471, %v1635
      %v1644 = vmul.f32 %v473, %v1635
      %v1645 = vmul.f32 %v474, %v1635
      %v1646 = vmul.f32 %v476, %v1635
      %v1647 = vmul.f32 %v477, %v1635
      %v1648 = vmul.f32 %v479, %v1635
      %v1649 = vmul.f32 %v480, %v1635
      %v1650 = vmul.f32 %v482, %v1635
      %v1651 = vmul.f32 %v483, %v1635
      %v1652 = vmul.f32 %v485, %v1635
      %v1653 = vmul.f32 %v486, %v1635
      %v1654 = vmul.f32 %v488, %v1635
      %v1655 = vmul.f32 %v489, %v1635
      %v1656 = vmul.f32 %v491, %v1635
      %v1657 = vmul.f32 %v492, %v1635
      %v1658 = vmul.f32 %v494, %v1635
      %v1659 = vmul.f32 %v495, %v1635
      %v1660 = vmul.f32 %v497, %v1635
      %v1661 = vmul.f32 %v498, %v1635
      %v1662 = vmul.f32 %v500, %v1635
      %v1663 = vmul.f32 %v501, %v1635
      %v1664 = vmul.f32 %v503, %v1635
      %v1665 = vmul.f32 %v504, %v1635
      %v1666 = vmul.f32 %v506, %v1635
      %v1667 = vmul.f32 %v507, %v1635
      %v1668 = vadd.f32 %v1598, %v1636
      %v1669 = vadd.f32 %v1599, %v1637
      %v1670 = vadd.f32 %v1600, %v1638
      %v1671 = vadd.f32 %v1601, %v1639
      %v1672 = vadd.f32 %v1602, %v1640
      %v1673 = vadd.f32 %v1603, %v1641
      %v1674 = vadd.f32 %v1604, %v1642
      %v1675 = vadd.f32 %v1605, %v1643
      %v1676 = vadd.f32 %v1606, %v1644
      %v1677 = vadd.f32 %v1607, %v1645
      %v1678 = vadd.f32 %v1608, %v1646
      %v1679 = vadd.f32 %v1609, %v1647
      %v1680 = vadd.f32 %v1610, %v1648
      %v1681 = vadd.f32 %v1611, %v1649
      %v1682 = vadd.f32 %v1612, %v1650
      %v1683 = vadd.f32 %v1613, %v1651
      %v1684 = vadd.f32 %v1614, %v1652
      %v1685 = vadd.f32 %v1615, %v1653
      %v1686 = vadd.f32 %v1616, %v1654
      %v1687 = vadd.f32 %v1617, %v1655
      %v1688 = vadd.f32 %v1618, %v1656
      %v1689 = vadd.f32 %v1619, %v1657
      %v1690 = vadd.f32 %v1620, %v1658
      %v1691 = vadd.f32 %v1621, %v1659
      %v1692 = vadd.f32 %v1622, %v1660
      %v1693 = vadd.f32 %v1623, %v1661
      %v1694 = vadd.f32 %v1624, %v1662
      %v1695 = vadd.f32 %v1625, %v1663
      %v1696 = vadd.f32 %v1626, %v1664
      %v1697 = vadd.f32 %v1627, %v1665
      %v1698 = vadd.f32 %v1628, %v1666
      %v1699 = vadd.f32 %v1629, %v1667
      %v1700 = vld [vmem:[%s1630 + $0x1] sm:$0x1]
      %v1701 = vlaneseq
      %v1702 = vshrl.u32 %v1701, 7
      %v1703 = vsub.s32 0, %v1702
      %v1704 = vrot.slane %v1700, %v1703
      %v1705 = vmul.f32 %v461, %v1704
      %v1706 = vmul.f32 %v462, %v1704
      %v1707 = vmul.f32 %v463, %v1704
      %v1708 = vmul.f32 %v464, %v1704
      %v1709 = vmul.f32 %v465, %v1704
      %v1710 = vmul.f32 %v466, %v1704
      %v1711 = vmul.f32 %v467, %v1704
      %v1712 = vmul.f32 %v468, %v1704
      %v1713 = vmul.f32 %v469, %v1704
      %v1714 = vmul.f32 %v470, %v1704
      %v1715 = vmul.f32 %v471, %v1704
      %v1716 = vmul.f32 %v472, %v1704
      %v1717 = vmul.f32 %v473, %v1704
      %v1718 = vmul.f32 %v474, %v1704
      %v1719 = vmul.f32 %v475, %v1704
      %v1720 = vmul.f32 %v476, %v1704
      %v1721 = vmul.f32 %v477, %v1704
      %v1722 = vmul.f32 %v478, %v1704
      %v1723 = vmul.f32 %v479, %v1704
      %v1724 = vmul.f32 %v480, %v1704
      %v1725 = vmul.f32 %v481, %v1704
      %v1726 = vmul.f32 %v482, %v1704
      %v1727 = vmul.f32 %v483, %v1704
      %v1728 = vmul.f32 %v484, %v1704
      %v1729 = vmul.f32 %v485, %v1704
      %v1730 = vmul.f32 %v486, %v1704
      %v1731 = vmul.f32 %v487, %v1704
      %v1732 = vmul.f32 %v488, %v1704
      %v1733 = vmul.f32 %v489, %v1704
      %v1734 = vmul.f32 %v490, %v1704
      %v1735 = vmul.f32 %v491, %v1704
      %v1736 = vmul.f32 %v492, %v1704
      %v1737 = vmul.f32 %v493, %v1704
      %v1738 = vmul.f32 %v494, %v1704
      %v1739 = vmul.f32 %v495, %v1704
      %v1740 = vmul.f32 %v496, %v1704
      %v1741 = vmul.f32 %v497, %v1704
      %v1742 = vmul.f32 %v498, %v1704
      %v1743 = vmul.f32 %v499, %v1704
      %v1744 = vmul.f32 %v500, %v1704
      %v1745 = vmul.f32 %v501, %v1704
      %v1746 = vmul.f32 %v502, %v1704
      %v1747 = vmul.f32 %v503, %v1704
      %v1748 = vmul.f32 %v504, %v1704
      %v1749 = vmul.f32 %v505, %v1704
      %v1750 = vmul.f32 %v506, %v1704
      %v1751 = vmul.f32 %v507, %v1704
      %v1752 = vmul.f32 %v508, %v1704
      %v1801 = vrot.slane %v1705, 1
      %v1802 = vrot.slane %v1706, 1
      %v1803 = vsel %vm679, %v1801, %v1802
      %v1804 = vrot.slane %v1707, 1
      %v1805 = vsel %vm679, %v1802, %v1804
      %v1806 = vrot.slane %v1708, 1
      %v1807 = vrot.slane %v1709, 1
      %v1808 = vsel %vm679, %v1806, %v1807
      %v1809 = vrot.slane %v1710, 1
      %v1810 = vsel %vm679, %v1807, %v1809
      %v1811 = vrot.slane %v1711, 1
      %v1812 = vrot.slane %v1712, 1
      %v1813 = vsel %vm679, %v1811, %v1812
      %v1814 = vrot.slane %v1713, 1
      %v1815 = vsel %vm679, %v1812, %v1814
      %v1816 = vrot.slane %v1714, 1
      %v1817 = vrot.slane %v1715, 1
      %v1818 = vsel %vm679, %v1816, %v1817
      %v1819 = vrot.slane %v1716, 1
      %v1820 = vsel %vm679, %v1817, %v1819
      %v1821 = vrot.slane %v1717, 1
      %v1822 = vrot.slane %v1718, 1
      %v1823 = vsel %vm679, %v1821, %v1822
      %v1824 = vrot.slane %v1719, 1
      %v1825 = vsel %vm679, %v1822, %v1824
      %v1826 = vrot.slane %v1720, 1
      %v1827 = vrot.slane %v1721, 1
      %v1828 = vsel %vm679, %v1826, %v1827
      %v1829 = vrot.slane %v1722, 1
      %v1830 = vsel %vm679, %v1827, %v1829
      %v1831 = vrot.slane %v1723, 1
      %v1832 = vrot.slane %v1724, 1
      %v1833 = vsel %vm679, %v1831, %v1832
      %v1834 = vrot.slane %v1725, 1
      %v1835 = vsel %vm679, %v1832, %v1834
      %v1836 = vrot.slane %v1726, 1
      %v1837 = vrot.slane %v1727, 1
      %v1838 = vsel %vm679, %v1836, %v1837
      %v1839 = vrot.slane %v1728, 1
      %v1840 = vsel %vm679, %v1837, %v1839
      %v1841 = vrot.slane %v1729, 1
      %v1842 = vrot.slane %v1730, 1
      %v1843 = vsel %vm679, %v1841, %v1842
      %v1844 = vrot.slane %v1731, 1
      %v1845 = vsel %vm679, %v1842, %v1844
      %v1846 = vrot.slane %v1732, 1
      %v1847 = vrot.slane %v1733, 1
      %v1848 = vsel %vm679, %v1846, %v1847
      %v1849 = vrot.slane %v1734, 1
      %v1850 = vsel %vm679, %v1847, %v1849
      %v1851 = vrot.slane %v1735, 1
      %v1852 = vrot.slane %v1736, 1
      %v1853 = vsel %vm679, %v1851, %v1852
      %v1854 = vrot.slane %v1737, 1
      %v1855 = vsel %vm679, %v1852, %v1854
      %v1856 = vrot.slane %v1738, 1
      %v1857 = vrot.slane %v1739, 1
      %v1858 = vsel %vm679, %v1856, %v1857
      %v1859 = vrot.slane %v1740, 1
      %v1860 = vsel %vm679, %v1857, %v1859
      %v1861 = vrot.slane %v1741, 1
      %v1862 = vrot.slane %v1742, 1
      %v1863 = vsel %vm679, %v1861, %v1862
      %v1864 = vrot.slane %v1743, 1
      %v1865 = vsel %vm679, %v1862, %v1864
      %v1866 = vrot.slane %v1744, 1
      %v1867 = vrot.slane %v1745, 1
      %v1868 = vsel %vm679, %v1866, %v1867
      %v1869 = vrot.slane %v1746, 1
      %v1870 = vsel %vm679, %v1867, %v1869
      %v1871 = vrot.slane %v1747, 1
      %v1872 = vrot.slane %v1748, 1
      %v1873 = vsel %vm679, %v1871, %v1872
      %v1874 = vrot.slane %v1749, 1
      %v1875 = vsel %vm679, %v1872, %v1874
      %v1876 = vrot.slane %v1750, 1
      %v1877 = vrot.slane %v1751, 1
      %v1878 = vsel %vm679, %v1876, %v1877
      %v1879 = vrot.slane %v1752, 1
      %v1880 = vsel %vm679, %v1877, %v1879
      %v1913 = vadd.f32 %v1668, %v1803
      %v1914 = vadd.f32 %v1669, %v1805
      %v1915 = vadd.f32 %v1670, %v1808
      %v1916 = vadd.f32 %v1671, %v1810
      %v1917 = vadd.f32 %v1672, %v1813
      %v1918 = vadd.f32 %v1673, %v1815
      %v1919 = vadd.f32 %v1674, %v1818
      %v1920 = vadd.f32 %v1675, %v1820
      %v1921 = vadd.f32 %v1676, %v1823
      %v1922 = vadd.f32 %v1677, %v1825
      %v1923 = vadd.f32 %v1678, %v1828
      %v1924 = vadd.f32 %v1679, %v1830
      %v1925 = vadd.f32 %v1680, %v1833
      %v1926 = vadd.f32 %v1681, %v1835
      %v1927 = vadd.f32 %v1682, %v1838
      %v1928 = vadd.f32 %v1683, %v1840
      %v1929 = vadd.f32 %v1684, %v1843
      %v1930 = vadd.f32 %v1685, %v1845
      %v1931 = vadd.f32 %v1686, %v1848
      %v1932 = vadd.f32 %v1687, %v1850
      %v1933 = vadd.f32 %v1688, %v1853
      %v1934 = vadd.f32 %v1689, %v1855
      %v1935 = vadd.f32 %v1690, %v1858
      %v1936 = vadd.f32 %v1691, %v1860
      %v1937 = vadd.f32 %v1692, %v1863
      %v1938 = vadd.f32 %v1693, %v1865
      %v1939 = vadd.f32 %v1694, %v1868
      %v1940 = vadd.f32 %v1695, %v1870
      %v1941 = vadd.f32 %v1696, %v1873
      %v1942 = vadd.f32 %v1697, %v1875
      %v1943 = vadd.f32 %v1698, %v1878
      %v1944 = vadd.f32 %v1699, %v1880
      %v1945 = vld [vmem:[%s1630 + $0x2] sm:$0x1]
      %v1946 = vlaneseq
      %v1947 = vshrl.u32 %v1946, 7
      %v1948 = vsub.s32 0, %v1947
      %v1949 = vrot.slane %v1945, %v1948
      %v1950 = vmul.f32 %v461, %v1949
      %v1951 = vmul.f32 %v462, %v1949
      %v1952 = vmul.f32 %v463, %v1949
      %v1953 = vmul.f32 %v464, %v1949
      %v1954 = vmul.f32 %v465, %v1949
      %v1955 = vmul.f32 %v466, %v1949
      %v1956 = vmul.f32 %v467, %v1949
      %v1957 = vmul.f32 %v468, %v1949
      %v1958 = vmul.f32 %v469, %v1949
      %v1959 = vmul.f32 %v470, %v1949
      %v1960 = vmul.f32 %v471, %v1949
      %v1961 = vmul.f32 %v472, %v1949
      %v1962 = vmul.f32 %v473, %v1949
      %v1963 = vmul.f32 %v474, %v1949
      %v1964 = vmul.f32 %v475, %v1949
      %v1965 = vmul.f32 %v476, %v1949
      %v1966 = vmul.f32 %v477, %v1949
      %v1967 = vmul.f32 %v478, %v1949
      %v1968 = vmul.f32 %v479, %v1949
      %v1969 = vmul.f32 %v480, %v1949
      %v1970 = vmul.f32 %v481, %v1949
      %v1971 = vmul.f32 %v482, %v1949
      %v1972 = vmul.f32 %v483, %v1949
      %v1973 = vmul.f32 %v484, %v1949
      %v1974 = vmul.f32 %v485, %v1949
      %v1975 = vmul.f32 %v486, %v1949
      %v1976 = vmul.f32 %v487, %v1949
      %v1977 = vmul.f32 %v488, %v1949
      %v1978 = vmul.f32 %v489, %v1949
      %v1979 = vmul.f32 %v490, %v1949
      %v1980 = vmul.f32 %v491, %v1949
      %v1981 = vmul.f32 %v492, %v1949
      %v1982 = vmul.f32 %v493, %v1949
      %v1983 = vmul.f32 %v494, %v1949
      %v1984 = vmul.f32 %v495, %v1949
      %v1985 = vmul.f32 %v496, %v1949
      %v1986 = vmul.f32 %v497, %v1949
      %v1987 = vmul.f32 %v498, %v1949
      %v1988 = vmul.f32 %v499, %v1949
      %v1989 = vmul.f32 %v500, %v1949
      %v1990 = vmul.f32 %v501, %v1949
      %v1991 = vmul.f32 %v502, %v1949
      %v1992 = vmul.f32 %v503, %v1949
      %v1993 = vmul.f32 %v504, %v1949
      %v1994 = vmul.f32 %v505, %v1949
      %v1995 = vmul.f32 %v506, %v1949
      %v1996 = vmul.f32 %v507, %v1949
      %v1997 = vmul.f32 %v508, %v1949
      %v2046 = vrot.slane %v1950, 2
      %v2047 = vrot.slane %v1951, 2
      %v2048 = vsel %vm925, %v2046, %v2047
      %v2049 = vrot.slane %v1952, 2
      %v2050 = vsel %vm925, %v2047, %v2049
      %v2051 = vrot.slane %v1953, 2
      %v2052 = vrot.slane %v1954, 2
      %v2053 = vsel %vm925, %v2051, %v2052
      %v2054 = vrot.slane %v1955, 2
      %v2055 = vsel %vm925, %v2052, %v2054
      %v2056 = vrot.slane %v1956, 2
      %v2057 = vrot.slane %v1957, 2
      %v2058 = vsel %vm925, %v2056, %v2057
      %v2059 = vrot.slane %v1958, 2
      %v2060 = vsel %vm925, %v2057, %v2059
      %v2061 = vrot.slane %v1959, 2
      %v2062 = vrot.slane %v1960, 2
      %v2063 = vsel %vm925, %v2061, %v2062
      %v2064 = vrot.slane %v1961, 2
      %v2065 = vsel %vm925, %v2062, %v2064
      %v2066 = vrot.slane %v1962, 2
      %v2067 = vrot.slane %v1963, 2
      %v2068 = vsel %vm925, %v2066, %v2067
      %v2069 = vrot.slane %v1964, 2
      %v2070 = vsel %vm925, %v2067, %v2069
      %v2071 = vrot.slane %v1965, 2
      %v2072 = vrot.slane %v1966, 2
      %v2073 = vsel %vm925, %v2071, %v2072
      %v2074 = vrot.slane %v1967, 2
      %v2075 = vsel %vm925, %v2072, %v2074
      %v2076 = vrot.slane %v1968, 2
      %v2077 = vrot.slane %v1969, 2
      %v2078 = vsel %vm925, %v2076, %v2077
      %v2079 = vrot.slane %v1970, 2
      %v2080 = vsel %vm925, %v2077, %v2079
      %v2081 = vrot.slane %v1971, 2
      %v2082 = vrot.slane %v1972, 2
      %v2083 = vsel %vm925, %v2081, %v2082
      %v2084 = vrot.slane %v1973, 2
      %v2085 = vsel %vm925, %v2082, %v2084
      %v2086 = vrot.slane %v1974, 2
      %v2087 = vrot.slane %v1975, 2
      %v2088 = vsel %vm925, %v2086, %v2087
      %v2089 = vrot.slane %v1976, 2
      %v2090 = vsel %vm925, %v2087, %v2089
      %v2091 = vrot.slane %v1977, 2
      %v2092 = vrot.slane %v1978, 2
      %v2093 = vsel %vm925, %v2091, %v2092
      %v2094 = vrot.slane %v1979, 2
      %v2095 = vsel %vm925, %v2092, %v2094
      %v2096 = vrot.slane %v1980, 2
      %v2097 = vrot.slane %v1981, 2
      %v2098 = vsel %vm925, %v2096, %v2097
      %v2099 = vrot.slane %v1982, 2
      %v2100 = vsel %vm925, %v2097, %v2099
      %v2101 = vrot.slane %v1983, 2
      %v2102 = vrot.slane %v1984, 2
      %v2103 = vsel %vm925, %v2101, %v2102
      %v2104 = vrot.slane %v1985, 2
      %v2105 = vsel %vm925, %v2102, %v2104
      %v2106 = vrot.slane %v1986, 2
      %v2107 = vrot.slane %v1987, 2
      %v2108 = vsel %vm925, %v2106, %v2107
      %v2109 = vrot.slane %v1988, 2
      %v2110 = vsel %vm925, %v2107, %v2109
      %v2111 = vrot.slane %v1989, 2
      %v2112 = vrot.slane %v1990, 2
      %v2113 = vsel %vm925, %v2111, %v2112
      %v2114 = vrot.slane %v1991, 2
      %v2115 = vsel %vm925, %v2112, %v2114
      %v2116 = vrot.slane %v1992, 2
      %v2117 = vrot.slane %v1993, 2
      %v2118 = vsel %vm925, %v2116, %v2117
      %v2119 = vrot.slane %v1994, 2
      %v2120 = vsel %vm925, %v2117, %v2119
      %v2121 = vrot.slane %v1995, 2
      %v2122 = vrot.slane %v1996, 2
      %v2123 = vsel %vm925, %v2121, %v2122
      %v2124 = vrot.slane %v1997, 2
      %v2125 = vsel %vm925, %v2122, %v2124
      %v2158 = vadd.f32 %v1913, %v2048
      %v2159 = vadd.f32 %v1914, %v2050
      %v2160 = vadd.f32 %v1915, %v2053
      %v2161 = vadd.f32 %v1916, %v2055
      %v2162 = vadd.f32 %v1917, %v2058
      %v2163 = vadd.f32 %v1918, %v2060
      %v2164 = vadd.f32 %v1919, %v2063
      %v2165 = vadd.f32 %v1920, %v2065
      %v2166 = vadd.f32 %v1921, %v2068
      %v2167 = vadd.f32 %v1922, %v2070
      %v2168 = vadd.f32 %v1923, %v2073
      %v2169 = vadd.f32 %v1924, %v2075
      %v2170 = vadd.f32 %v1925, %v2078
      %v2171 = vadd.f32 %v1926, %v2080
      %v2172 = vadd.f32 %v1927, %v2083
      %v2173 = vadd.f32 %v1928, %v2085
      %v2174 = vadd.f32 %v1929, %v2088
      %v2175 = vadd.f32 %v1930, %v2090
      %v2176 = vadd.f32 %v1931, %v2093
      %v2177 = vadd.f32 %v1932, %v2095
      %v2178 = vadd.f32 %v1933, %v2098
      %v2179 = vadd.f32 %v1934, %v2100
      %v2180 = vadd.f32 %v1935, %v2103
      %v2181 = vadd.f32 %v1936, %v2105
      %v2182 = vadd.f32 %v1937, %v2108
      %v2183 = vadd.f32 %v1938, %v2110
      %v2184 = vadd.f32 %v1939, %v2113
      %v2185 = vadd.f32 %v1940, %v2115
      %v2186 = vadd.f32 %v1941, %v2118
      %v2187 = vadd.f32 %v1942, %v2120
      %v2188 = vadd.f32 %v1943, %v2123
      %v2189 = vadd.f32 %v1944, %v2125
      %v2190 = vsel %vm334, %v2158, 0.0
      %v2191 = vsel %vm334, %v2159, 0.0
      %v2192 = vadd.f32 %v2190, %v2191
      %v2193 = vsel %vm334, %v2160, 0.0
      %v2194 = vadd.f32 %v2192, %v2193
      %v2195 = vsel %vm334, %v2161, 0.0
      %v2196 = vadd.f32 %v2194, %v2195
      %v2197 = vsel %vm334, %v2162, 0.0
      %v2198 = vadd.f32 %v2196, %v2197
      %v2199 = vsel %vm334, %v2163, 0.0
      %v2200 = vadd.f32 %v2198, %v2199
      %v2201 = vsel %vm334, %v2164, 0.0
      %v2202 = vadd.f32 %v2200, %v2201
      %v2203 = vsel %vm334, %v2165, 0.0
      %v2204 = vadd.f32 %v2202, %v2203
      %v2205 = vsel %vm334, %v2166, 0.0
      %v2206 = vadd.f32 %v2204, %v2205
      %v2207 = vsel %vm334, %v2167, 0.0
      %v2208 = vadd.f32 %v2206, %v2207
      %v2209 = vsel %vm334, %v2168, 0.0
      %v2210 = vadd.f32 %v2208, %v2209
      %v2211 = vsel %vm334, %v2169, 0.0
      %v2212 = vadd.f32 %v2210, %v2211
      %v2213 = vsel %vm334, %v2170, 0.0
      %v2214 = vadd.f32 %v2212, %v2213
      %v2215 = vsel %vm334, %v2171, 0.0
      %v2216 = vadd.f32 %v2214, %v2215
      %v2217 = vsel %vm334, %v2172, 0.0
      %v2218 = vadd.f32 %v2216, %v2217
      %v2219 = vsel %vm334, %v2173, 0.0
      %v2220 = vadd.f32 %v2218, %v2219
      %v2221 = vsel %vm334, %v2174, 0.0
      %v2222 = vadd.f32 %v2220, %v2221
      %v2223 = vsel %vm334, %v2175, 0.0
      %v2224 = vadd.f32 %v2222, %v2223
      %v2225 = vsel %vm334, %v2176, 0.0
      %v2226 = vadd.f32 %v2224, %v2225
      %v2227 = vsel %vm334, %v2177, 0.0
      %v2228 = vadd.f32 %v2226, %v2227
      %v2229 = vsel %vm334, %v2178, 0.0
      %v2230 = vadd.f32 %v2228, %v2229
      %v2231 = vsel %vm334, %v2179, 0.0
      %v2232 = vadd.f32 %v2230, %v2231
      %v2233 = vsel %vm334, %v2180, 0.0
      %v2234 = vadd.f32 %v2232, %v2233
      %v2235 = vsel %vm334, %v2181, 0.0
      %v2236 = vadd.f32 %v2234, %v2235
      %v2237 = vsel %vm334, %v2182, 0.0
      %v2238 = vadd.f32 %v2236, %v2237
      %v2239 = vsel %vm334, %v2183, 0.0
      %v2240 = vadd.f32 %v2238, %v2239
      %v2241 = vsel %vm334, %v2184, 0.0
      %v2242 = vadd.f32 %v2240, %v2241
      %v2243 = vsel %vm334, %v2185, 0.0
      %v2244 = vadd.f32 %v2242, %v2243
      %v2245 = vsel %vm334, %v2186, 0.0
      %v2246 = vadd.f32 %v2244, %v2245
      %v2247 = vsel %vm334, %v2187, 0.0
      %v2248 = vadd.f32 %v2246, %v2247
      %v2249 = vsel %vm334, %v2188, 0.0
      %v2250 = vadd.f32 %v2248, %v2249
      %v2251 = vsel %vm334, %v2189, 0.0
      %v2252 = vadd.f32 %v2250, %v2251
      %v2253 = vrot.slane %v2252, 4
      %v2254 = vadd.f32 %v2252, %v2253
      %v2255 = vrot.slane %v2254, 2
      %v2256 = vadd.f32 %v2254, %v2255
      %v2257 = vrot.slane %v2256, 1
      %v2258 = vadd.f32 %v2256, %v2257
      %v2259 = vmul.f32 %v2258, 0.00390625
      %v2260 = vld [vmem:[%s2] sm:$0xff]
      %v2262 = vsel %vm334, %v2259, 0
      %2264 = vmatprep.subr.mxu0 0.0
      %2265 = vmatpush1.msra.mxu0 %v2260
      %2266 = vmatprep.subr.mxu0 0.0
      %2267 = vmatpush1.msra.mxu0 0.0
      %2268 = vmatprep.subr.mxu0 0.0
      %2269 = vmatpush1.msra.mxu0 0.0
      %2270 = vmatprep.subr.mxu0 0.0
      %2271 = vmatpush1.msra.mxu0 0.0
      %2272 = vmatprep.subr.mxu0 0.0
      %2273 = vmatpush1.msra.mxu0 0.0
      %2274 = vmatprep.subr.mxu0 0.0
      %2275 = vmatpush1.msra.mxu0 0.0
      %2276 = vmatprep.subr.mxu0 0.0
      %2277 = vmatpush1.msra.mxu0 0.0
      %2278 = vmatprep.subr.mxu0 0.0
      %2279 = vmatpush1.msra.mxu0 0.0
      %2280 = vmatprep.subr.mxu0 0.0
      %2281 = vmatpush1.msra.mxu0 0.0
      %2282 = vmatprep.subr.mxu0 0.0
      %2283 = vmatpush1.msra.mxu0 0.0
      %2284 = vmatprep.subr.mxu0 0.0
      %2285 = vmatpush1.msra.mxu0 0.0
      %2286 = vmatprep.subr.mxu0 0.0
      %2287 = vmatpush1.msra.mxu0 0.0
      %2288 = vmatprep.subr.mxu0 0.0
      %2289 = vmatpush1.msra.mxu0 0.0
      %2290 = vmatprep.subr.mxu0 0.0
      %2291 = vmatpush1.msra.mxu0 0.0
      %2292 = vmatprep.subr.mxu0 0.0
      %2293 = vmatpush1.msra.mxu0 0.0
      %2294 = vmatprep.subr.mxu0 0.0
      %2295 = vmatpush1.msra.mxu0 0.0
      %2296 = vmatprep.subr.mxu0 0.0
      %2297 = vmatpush1.msra.mxu0 0.0
      %2298 = vmatprep.subr.mxu0 0.0
      %2299 = vmatpush1.msra.mxu0 0.0
      %2300 = vmatprep.subr.mxu0 0.0
      %2301 = vmatpush1.msra.mxu0 0.0
      %2302 = vmatprep.subr.mxu0 0.0
      %2303 = vmatpush1.msra.mxu0 0.0
      %2304 = vmatprep.subr.mxu0 0.0
      %2305 = vmatpush1.msra.mxu0 0.0
      %2306 = vmatprep.subr.mxu0 0.0
      %2307 = vmatpush1.msra.mxu0 0.0
      %2308 = vmatprep.subr.mxu0 0.0
      %2309 = vmatpush1.msra.mxu0 0.0
      %2310 = vmatprep.subr.mxu0 0.0
      %2311 = vmatpush1.msra.mxu0 0.0
      %2312 = vmatprep.subr.mxu0 0.0
      %2313 = vmatpush1.msra.mxu0 0.0
      %2314 = vmatprep.subr.mxu0 0.0
      %2315 = vmatpush1.msra.mxu0 0.0
      %2316 = vmatprep.subr.mxu0 0.0
      %2317 = vmatpush1.msra.mxu0 0.0
      %2318 = vmatprep.subr.mxu0 0.0
      %2319 = vmatpush1.msra.mxu0 0.0
      %2320 = vmatprep.subr.mxu0 0.0
      %2321 = vmatpush1.msra.mxu0 0.0
      %2322 = vmatprep.subr.mxu0 0.0
      %2323 = vmatpush1.msra.mxu0 0.0
      %2324 = vmatprep.subr.mxu0 0.0
      %2325 = vmatpush1.msra.mxu0 0.0
      %2326 = vmatprep.subr.mxu0 0.0
      %2327 = vmatpush1.msra.mxu0 0.0
      %2328 = vmatprep.mubr.f32.mxu0 0.0
      %2329 = vmatmul.mubr.f32.gmra.mrb[0].mxu0 %v2262
      %v2330 = vpop.f32.mrb[0].mxu0
      %v2331 = vadd.f32 0.0, %v2330
      %v2332 = vpop.f32.mrb[0].mxu0
      %2333 = vdwg.mxu0
      %v2334 = vmax.f32 %v2331, 0.0
      %v2335 = vld [vmem:[%s3] sm:$0xff]
      %v2337 = vsel %vm334, %v2334, 0
      %2339 = vmatprep.subr.mxu0 0.0
      %2340 = vmatpush1.msra.mxu0 %v2335
      %2341 = vmatprep.subr.mxu0 0.0
      %2342 = vmatpush1.msra.mxu0 0.0
      %2343 = vmatprep.subr.mxu0 0.0
      %2344 = vmatpush1.msra.mxu0 0.0
      %2345 = vmatprep.subr.mxu0 0.0
      %2346 = vmatpush1.msra.mxu0 0.0
      %2347 = vmatprep.subr.mxu0 0.0
      %2348 = vmatpush1.msra.mxu0 0.0
      %2349 = vmatprep.subr.mxu0 0.0
      %2350 = vmatpush1.msra.mxu0 0.0
      %2351 = vmatprep.subr.mxu0 0.0
      %2352 = vmatpush1.msra.mxu0 0.0
      %2353 = vmatprep.subr.mxu0 0.0
      %2354 = vmatpush1.msra.mxu0 0.0
      %2355 = vmatprep.subr.mxu0 0.0
      %2356 = vmatpush1.msra.mxu0 0.0
      %2357 = vmatprep.subr.mxu0 0.0
      %2358 = vmatpush1.msra.mxu0 0.0
      %2359 = vmatprep.subr.mxu0 0.0
      %2360 = vmatpush1.msra.mxu0 0.0
      %2361 = vmatprep.subr.mxu0 0.0
      %2362 = vmatpush1.msra.mxu0 0.0
      %2363 = vmatprep.subr.mxu0 0.0
      %2364 = vmatpush1.msra.mxu0 0.0
      %2365 = vmatprep.subr.mxu0 0.0
      %2366 = vmatpush1.msra.mxu0 0.0
      %2367 = vmatprep.subr.mxu0 0.0
      %2368 = vmatpush1.msra.mxu0 0.0
      %2369 = vmatprep.subr.mxu0 0.0
      %2370 = vmatpush1.msra.mxu0 0.0
      %2371 = vmatprep.subr.mxu0 0.0
      %2372 = vmatpush1.msra.mxu0 0.0
      %2373 = vmatprep.subr.mxu0 0.0
      %2374 = vmatpush1.msra.mxu0 0.0
      %2375 = vmatprep.subr.mxu0 0.0
      %2376 = vmatpush1.msra.mxu0 0.0
      %2377 = vmatprep.subr.mxu0 0.0
      %2378 = vmatpush1.msra.mxu0 0.0
      %2379 = vmatprep.subr.mxu0 0.0
      %2380 = vmatpush1.msra.mxu0 0.0
      %2381 = vmatprep.subr.mxu0 0.0
      %2382 = vmatpush1.msra.mxu0 0.0
      %2383 = vmatprep.subr.mxu0 0.0
      %2384 = vmatpush1.msra.mxu0 0.0
      %2385 = vmatprep.subr.mxu0 0.0
      %2386 = vmatpush1.msra.mxu0 0.0
      %2387 = vmatprep.subr.mxu0 0.0
      %2388 = vmatpush1.msra.mxu0 0.0
      %2389 = vmatprep.subr.mxu0 0.0
      %2390 = vmatpush1.msra.mxu0 0.0
      %2391 = vmatprep.subr.mxu0 0.0
      %2392 = vmatpush1.msra.mxu0 0.0
      %2393 = vmatprep.subr.mxu0 0.0
      %2394 = vmatpush1.msra.mxu0 0.0
      %2395 = vmatprep.subr.mxu0 0.0
      %2396 = vmatpush1.msra.mxu0 0.0
      %2397 = vmatprep.subr.mxu0 0.0
      %2398 = vmatpush1.msra.mxu0 0.0
      %2399 = vmatprep.subr.mxu0 0.0
      %2400 = vmatpush1.msra.mxu0 0.0
      %2401 = vmatprep.subr.mxu0 0.0
      %2402 = vmatpush1.msra.mxu0 0.0
      %2403 = vmatprep.mubr.f32.mxu0 0.0
      %2404 = vmatmul.mubr.f32.gmra.mrb[0].mxu0 %v2337
      %v2405 = vpop.f32.mrb[0].mxu0
      %v2406 = vadd.f32 0.0, %v2405
      %v2407 = vpop.f32.mrb[0].mxu0
      %2408 = vdwg.mxu0
      %v2409 = vxor.u32 %v2406, 2147483648
      %v2410 = vmul.f32 %v2409, 1.442695
      %v2411 = vpow.pop %v2410
      %v2412 = vadd.f32 %v2411, 1.0
      %v2413 = vrcp.pop %v2412
      %v2414 = vmul.f32 1.0, %v2413
      %v2415 = vld [vmem:[%s4] sm:$0x1]
      %v2416 = vmul.f32 %v2414, %v2415
      %v2417 = vld [vmem:[%s5] sm:$0x1]
      %v2418 = vlaneseq
      %v2419 = vshrl.u32 %v2418, 7
      %v2420 = vsub.s32 0, %v2419
      %v2421 = vrot.slane %v2416, %v2420
      %v2422 = vmul.f32 %v2158, %v2421
      %v2423 = vmul.f32 %v2159, %v2421
      %v2424 = vmul.f32 %v2160, %v2421
      %v2425 = vmul.f32 %v2161, %v2421
      %v2426 = vmul.f32 %v2162, %v2421
      %v2427 = vmul.f32 %v2163, %v2421
      %v2428 = vmul.f32 %v2164, %v2421
      %v2429 = vmul.f32 %v2165, %v2421
      %v2430 = vmul.f32 %v2166, %v2421
      %v2431 = vmul.f32 %v2167, %v2421
      %v2432 = vmul.f32 %v2168, %v2421
      %v2433 = vmul.f32 %v2169, %v2421
      %v2434 = vmul.f32 %v2170, %v2421
      %v2435 = vmul.f32 %v2171, %v2421
      %v2436 = vmul.f32 %v2172, %v2421
      %v2437 = vmul.f32 %v2173, %v2421
      %v2438 = vmul.f32 %v2174, %v2421
      %v2439 = vmul.f32 %v2175, %v2421
      %v2440 = vmul.f32 %v2176, %v2421
      %v2441 = vmul.f32 %v2177, %v2421
      %v2442 = vmul.f32 %v2178, %v2421
      %v2443 = vmul.f32 %v2179, %v2421
      %v2444 = vmul.f32 %v2180, %v2421
      %v2445 = vmul.f32 %v2181, %v2421
      %v2446 = vmul.f32 %v2182, %v2421
      %v2447 = vmul.f32 %v2183, %v2421
      %v2448 = vmul.f32 %v2184, %v2421
      %v2449 = vmul.f32 %v2185, %v2421
      %v2450 = vmul.f32 %v2186, %v2421
      %v2451 = vmul.f32 %v2187, %v2421
      %v2452 = vmul.f32 %v2188, %v2421
      %v2453 = vmul.f32 %v2189, %v2421
      %v2455 = vlaneseq
      %v2456 = vshrl.u32 %v2455, 7
      %v2457 = vsub.s32 0, %v2456
      %v2458 = vrot.slane %v2417, %v2457
      %v2460 = vadd.f32 %v2422, %v2458
      %v2461 = vadd.f32 %v2423, %v2458
      %v2462 = vadd.f32 %v2424, %v2458
      %v2463 = vadd.f32 %v2425, %v2458
      %v2464 = vadd.f32 %v2426, %v2458
      %v2465 = vadd.f32 %v2427, %v2458
      %v2466 = vadd.f32 %v2428, %v2458
      %v2467 = vadd.f32 %v2429, %v2458
      %v2468 = vadd.f32 %v2430, %v2458
      %v2469 = vadd.f32 %v2431, %v2458
      %v2470 = vadd.f32 %v2432, %v2458
      %v2471 = vadd.f32 %v2433, %v2458
      %v2472 = vadd.f32 %v2434, %v2458
      %v2473 = vadd.f32 %v2435, %v2458
      %v2474 = vadd.f32 %v2436, %v2458
      %v2475 = vadd.f32 %v2437, %v2458
      %v2476 = vadd.f32 %v2438, %v2458
      %v2477 = vadd.f32 %v2439, %v2458
      %v2478 = vadd.f32 %v2440, %v2458
      %v2479 = vadd.f32 %v2441, %v2458
      %v2480 = vadd.f32 %v2442, %v2458
      %v2481 = vadd.f32 %v2443, %v2458
      %v2482 = vadd.f32 %v2444, %v2458
      %v2483 = vadd.f32 %v2445, %v2458
      %v2484 = vadd.f32 %v2446, %v2458
      %v2485 = vadd.f32 %v2447, %v2458
      %v2486 = vadd.f32 %v2448, %v2458
      %v2487 = vadd.f32 %v2449, %v2458
      %v2488 = vadd.f32 %v2450, %v2458
      %v2489 = vadd.f32 %v2451, %v2458
      %v2490 = vadd.f32 %v2452, %v2458
      %v2491 = vadd.f32 %v2453, %v2458
      %v2492 = vmax.f32 %v2460, 0.0
      %v2493 = vmax.f32 %v2461, 0.0
      %v2494 = vmax.f32 %v2462, 0.0
      %v2495 = vmax.f32 %v2463, 0.0
      %v2496 = vmax.f32 %v2464, 0.0
      %v2497 = vmax.f32 %v2465, 0.0
      %v2498 = vmax.f32 %v2466, 0.0
      %v2499 = vmax.f32 %v2467, 0.0
      %v2500 = vmax.f32 %v2468, 0.0
      %v2501 = vmax.f32 %v2469, 0.0
      %v2502 = vmax.f32 %v2470, 0.0
      %v2503 = vmax.f32 %v2471, 0.0
      %v2504 = vmax.f32 %v2472, 0.0
      %v2505 = vmax.f32 %v2473, 0.0
      %v2506 = vmax.f32 %v2474, 0.0
      %v2507 = vmax.f32 %v2475, 0.0
      %v2508 = vmax.f32 %v2476, 0.0
      %v2509 = vmax.f32 %v2477, 0.0
      %v2510 = vmax.f32 %v2478, 0.0
      %v2511 = vmax.f32 %v2479, 0.0
      %v2512 = vmax.f32 %v2480, 0.0
      %v2513 = vmax.f32 %v2481, 0.0
      %v2514 = vmax.f32 %v2482, 0.0
      %v2515 = vmax.f32 %v2483, 0.0
      %v2516 = vmax.f32 %v2484, 0.0
      %v2517 = vmax.f32 %v2485, 0.0
      %v2518 = vmax.f32 %v2486, 0.0
      %v2519 = vmax.f32 %v2487, 0.0
      %v2520 = vmax.f32 %v2488, 0.0
      %v2521 = vmax.f32 %v2489, 0.0
      %v2522 = vmax.f32 %v2490, 0.0
      %v2523 = vmax.f32 %v2491, 0.0
      %v2524 = vpack.c.bf16 %v2493, %v2492
      %v2525 = vpack.c.bf16 %v2495, %v2494
      %v2526 = vpack.c.bf16 %v2497, %v2496
      %v2527 = vpack.c.bf16 %v2499, %v2498
      %v2528 = vpack.c.bf16 %v2501, %v2500
      %v2529 = vpack.c.bf16 %v2503, %v2502
      %v2530 = vpack.c.bf16 %v2505, %v2504
      %v2531 = vpack.c.bf16 %v2507, %v2506
      %v2532 = vpack.c.bf16 %v2509, %v2508
      %v2533 = vpack.c.bf16 %v2511, %v2510
      %v2534 = vpack.c.bf16 %v2513, %v2512
      %v2535 = vpack.c.bf16 %v2515, %v2514
      %v2536 = vpack.c.bf16 %v2517, %v2516
      %v2537 = vpack.c.bf16 %v2519, %v2518
      %v2538 = vpack.c.bf16 %v2521, %v2520
      %v2539 = vpack.c.bf16 %v2523, %v2522
      %v2540 = vld [vmem:[%s6] sm:$0xf]
      %v2542 = vsel %vm334, %v2524, 0
      %v2545 = vsel %vm334, %v2525, 0
      %v2548 = vsel %vm334, %v2526, 0
      %v2551 = vsel %vm334, %v2527, 0
      %v2554 = vsel %vm334, %v2528, 0
      %v2557 = vsel %vm334, %v2529, 0
      %v2560 = vsel %vm334, %v2530, 0
      %v2563 = vsel %vm334, %v2531, 0
      %v2566 = vsel %vm334, %v2532, 0
      %v2569 = vsel %vm334, %v2533, 0
      %v2572 = vsel %vm334, %v2534, 0
      %v2575 = vsel %vm334, %v2535, 0
      %v2578 = vsel %vm334, %v2536, 0
      %v2581 = vsel %vm334, %v2537, 0
      %v2584 = vsel %vm334, %v2538, 0
      %v2587 = vsel %vm334, %v2539, 0
      %vm2589 = vcmask 1043456
      %v2591 = vsel %vm2589, %v2540, 0
      %2593 = vmatprep.subr.bf16.mxu0 0
      %2594 = vmatpush1.bf16.msra.mxu0 %v2591
      %2595 = vmatprep.subr.bf16.mxu0 0
      %2596 = vmatpush1.bf16.msra.mxu0 0
      %2597 = vmatprep.subr.bf16.mxu0 0
      %2598 = vmatpush1.bf16.msra.mxu0 0
      %2599 = vmatprep.subr.bf16.mxu0 0
      %2600 = vmatpush1.bf16.msra.mxu0 0
      %2601 = vmatprep.subr.bf16.mxu0 0
      %2602 = vmatpush1.bf16.msra.mxu0 0
      %2603 = vmatprep.subr.bf16.mxu0 0
      %2604 = vmatpush1.bf16.msra.mxu0 0
      %2605 = vmatprep.subr.bf16.mxu0 0
      %2606 = vmatpush1.bf16.msra.mxu0 0
      %2607 = vmatprep.subr.bf16.mxu0 0
      %2608 = vmatpush1.bf16.msra.mxu0 0
      %2609 = vmatprep.subr.bf16.mxu0 0
      %2610 = vmatpush1.bf16.msra.mxu0 0
      %2611 = vmatprep.subr.bf16.mxu0 0
      %2612 = vmatpush1.bf16.msra.mxu0 0
      %2613 = vmatprep.subr.bf16.mxu0 0
      %2614 = vmatpush1.bf16.msra.mxu0 0
      %2615 = vmatprep.subr.bf16.mxu0 0
      %2616 = vmatpush1.bf16.msra.mxu0 0
      %2617 = vmatprep.subr.bf16.mxu0 0
      %2618 = vmatpush1.bf16.msra.mxu0 0
      %2619 = vmatprep.subr.bf16.mxu0 0
      %2620 = vmatpush1.bf16.msra.mxu0 0
      %2621 = vmatprep.subr.bf16.mxu0 0
      %2622 = vmatpush1.bf16.msra.mxu0 0
      %2623 = vmatprep.subr.bf16.mxu0 0
      %2624 = vmatpush1.bf16.msra.mxu0 0
      %2625 = vmatprep.mubr.bf16.mxu0 0
      %2626 = vmatmul.mubr.bf16.gmra.mrb[0].mxu0 %v2542
      %v2627 = vpop.f32.mrb[0].mxu0
      %v2628 = vadd.f32 0.0, %v2627
      %v2629 = vpop.f32.mrb[0].mxu0
      %v2630 = vpop.f32.mrb[0].mxu0
      %v2631 = vadd.f32 0.0, %v2630
      %v2632 = vpop.f32.mrb[0].mxu0
      %2633 = vmatprep.mubr.bf16.mxu0 0
      %2634 = vmatmul.mubr.bf16.gmra.mrb[0].mxu0 %v2545
      %v2635 = vpop.f32.mrb[0].mxu0
      %v2636 = vadd.f32 0.0, %v2635
      %v2637 = vpop.f32.mrb[0].mxu0
      %v2638 = vpop.f32.mrb[0].mxu0
      %v2639 = vadd.f32 0.0, %v2638
      %v2640 = vpop.f32.mrb[0].mxu0
      %2641 = vmatprep.mubr.bf16.mxu0 0
      %2642 = vmatmul.mubr.bf16.gmra.mrb[0].mxu0 %v2548
      %v2643 = vpop.f32.mrb[0].mxu0
      %v2644 = vadd.f32 0.0, %v2643
      %v2645 = vpop.f32.mrb[0].mxu0
      %v2646 = vpop.f32.mrb[0].mxu0
      %v2647 = vadd.f32 0.0, %v2646
      %v2648 = vpop.f32.mrb[0].mxu0
      %2649 = vmatprep.mubr.bf16.mxu0 0
      %2650 = vmatmul.mubr.bf16.gmra.mrb[0].mxu0 %v2551
      %v2651 = vpop.f32.mrb[0].mxu0
      %v2652 = vadd.f32 0.0, %v2651
      %v2653 = vpop.f32.mrb[0].mxu0
      %v2654 = vpop.f32.mrb[0].mxu0
      %v2655 = vadd.f32 0.0, %v2654
      %v2656 = vpop.f32.mrb[0].mxu0
      %2657 = vmatprep.mubr.bf16.mxu0 0
      %2658 = vmatmul.mubr.bf16.gmra.mrb[0].mxu0 %v2554
      %v2659 = vpop.f32.mrb[0].mxu0
      %v2660 = vadd.f32 0.0, %v2659
      %v2661 = vpop.f32.mrb[0].mxu0
      %v2662 = vpop.f32.mrb[0].mxu0
      %v2663 = vadd.f32 0.0, %v2662
      %v2664 = vpop.f32.mrb[0].mxu0
      %2665 = vmatprep.mubr.bf16.mxu0 0
      %2666 = vmatmul.mubr.bf16.gmra.mrb[0].mxu0 %v2557
      %v2667 = vpop.f32.mrb[0].mxu0
      %v2668 = vadd.f32 0.0, %v2667
      %v2669 = vpop.f32.mrb[0].mxu0
      %v2670 = vpop.f32.mrb[0].mxu0
      %v2671 = vadd.f32 0.0, %v2670
      %v2672 = vpop.f32.mrb[0].mxu0
      %2673 = vmatprep.mubr.bf16.mxu0 0
      %2674 = vmatmul.mubr.bf16.gmra.mrb[0].mxu0 %v2560
      %v2675 = vpop.f32.mrb[0].mxu0
      %v2676 = vadd.f32 0.0, %v2675
      %v2677 = vpop.f32.mrb[0].mxu0
      %v2678 = vpop.f32.mrb[0].mxu0
      %v2679 = vadd.f32 0.0, %v2678
      %v2680 = vpop.f32.mrb[0].mxu0
      %2681 = vmatprep.mubr.bf16.mxu0 0
      %2682 = vmatmul.mubr.bf16.gmra.mrb[0].mxu0 %v2563
      %v2683 = vpop.f32.mrb[0].mxu0
      %v2684 = vadd.f32 0.0, %v2683
      %v2685 = vpop.f32.mrb[0].mxu0
      %v2686 = vpop.f32.mrb[0].mxu0
      %v2687 = vadd.f32 0.0, %v2686
      %v2688 = vpop.f32.mrb[0].mxu0
      %2689 = vmatprep.mubr.bf16.mxu0 0
      %2690 = vmatmul.mubr.bf16.gmra.mrb[0].mxu0 %v2566
      %v2691 = vpop.f32.mrb[0].mxu0
      %v2692 = vadd.f32 0.0, %v2691
      %v2693 = vpop.f32.mrb[0].mxu0
      %v2694 = vpop.f32.mrb[0].mxu0
      %v2695 = vadd.f32 0.0, %v2694
      %v2696 = vpop.f32.mrb[0].mxu0
      %2697 = vmatprep.mubr.bf16.mxu0 0
      %2698 = vmatmul.mubr.bf16.gmra.mrb[0].mxu0 %v2569
      %v2699 = vpop.f32.mrb[0].mxu0
      %v2700 = vadd.f32 0.0, %v2699
      %v2701 = vpop.f32.mrb[0].mxu0
      %v2702 = vpop.f32.mrb[0].mxu0
      %v2703 = vadd.f32 0.0, %v2702
      %v2704 = vpop.f32.mrb[0].mxu0
      %2705 = vmatprep.mubr.bf16.mxu0 0
      %2706 = vmatmul.mubr.bf16.gmra.mrb[0].mxu0 %v2572
      %v2707 = vpop.f32.mrb[0].mxu0
      %v2708 = vadd.f32 0.0, %v2707
      %v2709 = vpop.f32.mrb[0].mxu0
      %v2710 = vpop.f32.mrb[0].mxu0
      %v2711 = vadd.f32 0.0, %v2710
      %v2712 = vpop.f32.mrb[0].mxu0
      %2713 = vmatprep.mubr.bf16.mxu0 0
      %2714 = vmatmul.mubr.bf16.gmra.mrb[0].mxu0 %v2575
      %v2715 = vpop.f32.mrb[0].mxu0
      %v2716 = vadd.f32 0.0, %v2715
      %v2717 = vpop.f32.mrb[0].mxu0
      %v2718 = vpop.f32.mrb[0].mxu0
      %v2719 = vadd.f32 0.0, %v2718
      %v2720 = vpop.f32.mrb[0].mxu0
      %2721 = vmatprep.mubr.bf16.mxu0 0
      %2722 = vmatmul.mubr.bf16.gmra.mrb[0].mxu0 %v2578
      %v2723 = vpop.f32.mrb[0].mxu0
      %v2724 = vadd.f32 0.0, %v2723
      %v2725 = vpop.f32.mrb[0].mxu0
      %v2726 = vpop.f32.mrb[0].mxu0
      %v2727 = vadd.f32 0.0, %v2726
      %v2728 = vpop.f32.mrb[0].mxu0
      %2729 = vmatprep.mubr.bf16.mxu0 0
      %2730 = vmatmul.mubr.bf16.gmra.mrb[0].mxu0 %v2581
      %v2731 = vpop.f32.mrb[0].mxu0
      %v2732 = vadd.f32 0.0, %v2731
      %v2733 = vpop.f32.mrb[0].mxu0
      %v2734 = vpop.f32.mrb[0].mxu0
      %v2735 = vadd.f32 0.0, %v2734
      %v2736 = vpop.f32.mrb[0].mxu0
      %2737 = vmatprep.mubr.bf16.mxu0 0
      %2738 = vmatmul.mubr.bf16.gmra.mrb[0].mxu0 %v2584
      %v2739 = vpop.f32.mrb[0].mxu0
      %v2740 = vadd.f32 0.0, %v2739
      %v2741 = vpop.f32.mrb[0].mxu0
      %v2742 = vpop.f32.mrb[0].mxu0
      %v2743 = vadd.f32 0.0, %v2742
      %v2744 = vpop.f32.mrb[0].mxu0
      %2745 = vmatprep.mubr.bf16.mxu0 0
      %2746 = vmatmul.mubr.bf16.gmra.mrb[0].mxu0 %v2587
      %v2747 = vpop.f32.mrb[0].mxu0
      %v2748 = vadd.f32 0.0, %v2747
      %v2749 = vpop.f32.mrb[0].mxu0
      %v2750 = vpop.f32.mrb[0].mxu0
      %v2751 = vadd.f32 0.0, %v2750
      %v2752 = vpop.f32.mrb[0].mxu0
      %2753 = vdwg.mxu0
      %v2754 = vld [vmem:[%s7] sm:$0x1]
      %v2756 = vlaneseq
      %v2757 = vshrl.u32 %v2756, 7
      %v2758 = vsub.s32 0, %v2757
      %v2759 = vrot.slane %v2754, %v2758
      %v2761 = vmul.f32 %v2628, %v2759
      %v2762 = vmul.f32 %v2631, %v2759
      %v2763 = vmul.f32 %v2636, %v2759
      %v2764 = vmul.f32 %v2639, %v2759
      %v2765 = vmul.f32 %v2644, %v2759
      %v2766 = vmul.f32 %v2647, %v2759
      %v2767 = vmul.f32 %v2652, %v2759
      %v2768 = vmul.f32 %v2655, %v2759
      %v2769 = vmul.f32 %v2660, %v2759
      %v2770 = vmul.f32 %v2663, %v2759
      %v2771 = vmul.f32 %v2668, %v2759
      %v2772 = vmul.f32 %v2671, %v2759
      %v2773 = vmul.f32 %v2676, %v2759
      %v2774 = vmul.f32 %v2679, %v2759
      %v2775 = vmul.f32 %v2684, %v2759
      %v2776 = vmul.f32 %v2687, %v2759
      %v2777 = vmul.f32 %v2692, %v2759
      %v2778 = vmul.f32 %v2695, %v2759
      %v2779 = vmul.f32 %v2700, %v2759
      %v2780 = vmul.f32 %v2703, %v2759
      %v2781 = vmul.f32 %v2708, %v2759
      %v2782 = vmul.f32 %v2711, %v2759
      %v2783 = vmul.f32 %v2716, %v2759
      %v2784 = vmul.f32 %v2719, %v2759
      %v2785 = vmul.f32 %v2724, %v2759
      %v2786 = vmul.f32 %v2727, %v2759
      %v2787 = vmul.f32 %v2732, %v2759
      %v2788 = vmul.f32 %v2735, %v2759
      %v2789 = vmul.f32 %v2740, %v2759
      %v2790 = vmul.f32 %v2743, %v2759
      %v2791 = vmul.f32 %v2748, %v2759
      %v2792 = vmul.f32 %v2751, %v2759
      %v2793 = vld [vmem:[%s8] sm:$0x1]
      %v2795 = vlaneseq
      %v2796 = vshrl.u32 %v2795, 7
      %v2797 = vsub.s32 0, %v2796
      %v2798 = vrot.slane %v2793, %v2797
      %v2800 = vadd.f32 %v2761, %v2798
      %v2801 = vadd.f32 %v2762, %v2798
      %v2802 = vadd.f32 %v2763, %v2798
      %v2803 = vadd.f32 %v2764, %v2798
      %v2804 = vadd.f32 %v2765, %v2798
      %v2805 = vadd.f32 %v2766, %v2798
      %v2806 = vadd.f32 %v2767, %v2798
      %v2807 = vadd.f32 %v2768, %v2798
      %v2808 = vadd.f32 %v2769, %v2798
      %v2809 = vadd.f32 %v2770, %v2798
      %v2810 = vadd.f32 %v2771, %v2798
      %v2811 = vadd.f32 %v2772, %v2798
      %v2812 = vadd.f32 %v2773, %v2798
      %v2813 = vadd.f32 %v2774, %v2798
      %v2814 = vadd.f32 %v2775, %v2798
      %v2815 = vadd.f32 %v2776, %v2798
      %v2816 = vadd.f32 %v2777, %v2798
      %v2817 = vadd.f32 %v2778, %v2798
      %v2818 = vadd.f32 %v2779, %v2798
      %v2819 = vadd.f32 %v2780, %v2798
      %v2820 = vadd.f32 %v2781, %v2798
      %v2821 = vadd.f32 %v2782, %v2798
      %v2822 = vadd.f32 %v2783, %v2798
      %v2823 = vadd.f32 %v2784, %v2798
      %v2824 = vadd.f32 %v2785, %v2798
      %v2825 = vadd.f32 %v2786, %v2798
      %v2826 = vadd.f32 %v2787, %v2798
      %v2827 = vadd.f32 %v2788, %v2798
      %v2828 = vadd.f32 %v2789, %v2798
      %v2829 = vadd.f32 %v2790, %v2798
      %v2830 = vadd.f32 %v2791, %v2798
      %v2831 = vadd.f32 %v2792, %v2798
      %v2832 = vmax.f32 %v2800, 0.0
      %v2833 = vmax.f32 %v2801, 0.0
      %v2834 = vmax.f32 %v2802, 0.0
      %v2835 = vmax.f32 %v2803, 0.0
      %v2836 = vmax.f32 %v2804, 0.0
      %v2837 = vmax.f32 %v2805, 0.0
      %v2838 = vmax.f32 %v2806, 0.0
      %v2839 = vmax.f32 %v2807, 0.0
      %v2840 = vmax.f32 %v2808, 0.0
      %v2841 = vmax.f32 %v2809, 0.0
      %v2842 = vmax.f32 %v2810, 0.0
      %v2843 = vmax.f32 %v2811, 0.0
      %v2844 = vmax.f32 %v2812, 0.0
      %v2845 = vmax.f32 %v2813, 0.0
      %v2846 = vmax.f32 %v2814, 0.0
      %v2847 = vmax.f32 %v2815, 0.0
      %v2848 = vmax.f32 %v2816, 0.0
      %v2849 = vmax.f32 %v2817, 0.0
      %v2850 = vmax.f32 %v2818, 0.0
      %v2851 = vmax.f32 %v2819, 0.0
      %v2852 = vmax.f32 %v2820, 0.0
      %v2853 = vmax.f32 %v2821, 0.0
      %v2854 = vmax.f32 %v2822, 0.0
      %v2855 = vmax.f32 %v2823, 0.0
      %v2856 = vmax.f32 %v2824, 0.0
      %v2857 = vmax.f32 %v2825, 0.0
      %v2858 = vmax.f32 %v2826, 0.0
      %v2859 = vmax.f32 %v2827, 0.0
      %v2860 = vmax.f32 %v2828, 0.0
      %v2861 = vmax.f32 %v2829, 0.0
      %v2862 = vmax.f32 %v2830, 0.0
      %v2863 = vmax.f32 %v2831, 0.0
      %vm2864 = vcmask 130048
      %2865 = vst.msk [vmem:[%s332] sm:$0xff] %vm2864, %v2832
      %2866 = vst.msk [vmem:[%s332 + $0x8] sm:$0xff] %vm2864, %v2833
      %2867 = vst.msk [vmem:[%s332 + $0x10] sm:$0xff] %vm2864, %v2834
      %2868 = vst.msk [vmem:[%s332 + $0x18] sm:$0xff] %vm2864, %v2835
      %2869 = vst.msk [vmem:[%s332 + $0x20] sm:$0xff] %vm2864, %v2836
      %2870 = vst.msk [vmem:[%s332 + $0x28] sm:$0xff] %vm2864, %v2837
      %2871 = vst.msk [vmem:[%s332 + $0x30] sm:$0xff] %vm2864, %v2838
      %2872 = vst.msk [vmem:[%s332 + $0x38] sm:$0xff] %vm2864, %v2839
      %2873 = vst.msk [vmem:[%s332 + $0x40] sm:$0xff] %vm2864, %v2840
      %2874 = vst.msk [vmem:[%s332 + $0x48] sm:$0xff] %vm2864, %v2841
      %2875 = vst.msk [vmem:[%s332 + $0x50] sm:$0xff] %vm2864, %v2842
      %2876 = vst.msk [vmem:[%s332 + $0x58] sm:$0xff] %vm2864, %v2843
      %2877 = vst.msk [vmem:[%s332 + $0x60] sm:$0xff] %vm2864, %v2844
      %2878 = vst.msk [vmem:[%s332 + $0x68] sm:$0xff] %vm2864, %v2845
      %2879 = vst.msk [vmem:[%s332 + $0x70] sm:$0xff] %vm2864, %v2846
      %2880 = vst.msk [vmem:[%s332 + $0x78] sm:$0xff] %vm2864, %v2847
      %2881 = vst.msk [vmem:[%s332 + $0x80] sm:$0xff] %vm2864, %v2848
      %2882 = vst.msk [vmem:[%s332 + $0x88] sm:$0xff] %vm2864, %v2849
      %2883 = vst.msk [vmem:[%s332 + $0x90] sm:$0xff] %vm2864, %v2850
      %2884 = vst.msk [vmem:[%s332 + $0x98] sm:$0xff] %vm2864, %v2851
      %2885 = vst.msk [vmem:[%s332 + $0xa0] sm:$0xff] %vm2864, %v2852
      %2886 = vst.msk [vmem:[%s332 + $0xa8] sm:$0xff] %vm2864, %v2853
      %2887 = vst.msk [vmem:[%s332 + $0xb0] sm:$0xff] %vm2864, %v2854
      %2888 = vst.msk [vmem:[%s332 + $0xb8] sm:$0xff] %vm2864, %v2855
      %2889 = vst.msk [vmem:[%s332 + $0xc0] sm:$0xff] %vm2864, %v2856
      %2890 = vst.msk [vmem:[%s332 + $0xc8] sm:$0xff] %vm2864, %v2857
      %2891 = vst.msk [vmem:[%s332 + $0xd0] sm:$0xff] %vm2864, %v2858
      %2892 = vst.msk [vmem:[%s332 + $0xd8] sm:$0xff] %vm2864, %v2859
      %2893 = vst.msk [vmem:[%s332 + $0xe0] sm:$0xff] %vm2864, %v2860
      %2894 = vst.msk [vmem:[%s332 + $0xe8] sm:$0xff] %vm2864, %v2861
      %2895 = vst.msk [vmem:[%s332 + $0xf0] sm:$0xff] %vm2864, %v2862
      %2896 = vst.msk [vmem:[%s332 + $0xf8] sm:$0xff] %vm2864, %v2863
      %p2897 = scmp.lt.s32.totalorder %s20, 1
      %s2898 = scalar_select %p2897, %s20, 1
      %s2899 = smul.addr %s2898, 32
      %s2900 = smul.addr %s2899, 8
      %s2901 = scalar_lea.vmem %s9, %s2900
      // Predicated region
      $region57: #{tpu_custom_call.1} parent=55 // pred_check
        %p2902 = pneg %p232
      $region58: #{tpu_custom_call.1} parent=55 // pred_check_branch
        %2904 = sbr.rel (%p2902) target = $region60
      $region59: #{tpu_custom_call.1} parent=55 // pred_region
        _
      $region60: #{tpu_custom_call.1} parent=55 // pred_fallthru
        _
    $region56: #{tpu_custom_call.1} parent=5 // pred_fallthru
      _
    %p2905 = scmp.le.s32.totalorder 2, %s15
    // Predicated region
    $region61: #{tpu_custom_call.1} parent=5 // pred_check
      %p2906 = pneg %p2905
    $region62: #{tpu_custom_call.1} parent=5 // pred_check_branch
      %2908 = sbr.rel (%p2906) target = $region64
    $region63: #{tpu_custom_call.1} parent=5 // pred_region
      %s2909 = ssub.s32 %s15, 2
      // Predicated region
      $region65: #{tpu_custom_call.1} parent=63 // pred_check
        %p2910 = pneg %p238
      $region66: #{tpu_custom_call.1} parent=63 // pred_check_branch
        %2912 = sbr.rel (%p2910) target = $region68
      $region67: #{tpu_custom_call.1} parent=63 // pred_region
        %p2913 = scmp.lt.s32.totalorder %s21, 1
        %s2914 = scalar_select %p2913, %s21, 1
        %s2915 = smul.addr %s2914, 32
        %s2916 = smul.addr %s2915, 8
        %s2917 = scalar_lea.vmem %s9, %s2916
      $region68: #{tpu_custom_call.1} parent=63 // pred_fallthru
        _
    $region64: #{tpu_custom_call.1} parent=5 // pred_fallthru
      _
  $region6: #{tpu_custom_call.1} parent=0 // loop_footer
    %s19 = sadd.s32 1, %s15
  $region7: #{tpu_custom_call.1} parent=0 // loop_footer_branch
    %14 = sbr.rel target = $region3
  $region8: #{tpu_custom_call.1} parent=0 // loop_exit
    _

</llo_original>
